<compile_context>
chip_gen: v7x
topology: tpu7x:2x2x1
jax: 0.10.0
libtpu: 0.0.40
codegen_flags: <defaults>
</compile_context>

<pallas_src>
import functools

import jax
import jax.numpy as jnp
from jax import lax
from jax.experimental import pallas as pl
from jax.experimental.pallas import tpu as pltpu

# TODO(synk): dropout_p is undefined in the original PyTorch file; we treat it as 0.0
# (inference / eval semantics), so dropout is the identity.
DROPOUT_P = 0.0

NEG_INF = -1e30  # finite "-inf" so masked exp underflows to exactly 0.0


def flash_sdpa_kernel(scale_ref, q_ref, k_ref, v_ref, o_ref,
                      m_scr, l_scr, acc_scr, *, n_valid, mask_kv, precision):
    # q_ref: (tm, D), k_ref: (tk, D), v_ref: (tk, Dv), o_ref: (tm, Dv)
    kv = pl.program_id(1)
    n_kv = pl.num_programs(1)

    @pl.when(kv == 0)
    def _():
        m_scr[...] = jnp.full_like(m_scr, NEG_INF)
        l_scr[...] = jnp.zeros_like(l_scr)
        acc_scr[...] = jnp.zeros_like(acc_scr)

    # Scale the (tm, D) q tile in its *native* dtype (cheaper than scaling the
    # (tm, tk) logits, and no f32 upcast of the MXU operands).
    q = q_ref[...] * scale_ref[0].astype(q_ref.dtype)

    # NT matmul on the MXU: contract the last dims of q and k (no transpose).
    s = lax.dot_general(
        q, k_ref[...],
        dimension_numbers=(((1,), (1,)), ((), ())),
        preferred_element_type=jnp.float32,
        precision=precision)                         # (tm, tk) f32

    v_blk = v_ref[...]
    if mask_kv:
        # Only the last KV tile contains out-of-range rows; their contents are
        # undefined (NOT zero).  For every other tile `limit >= tk`, so these
        # selects are identities there.
        tk = k_ref.shape[0]
        limit = n_valid - kv * tk
        col = lax.broadcasted_iota(jnp.int32, (1, tk), 1)
        s = jnp.where(col < limit, s, NEG_INF)
        row = lax.broadcasted_iota(jnp.int32, (tk, 1), 0)
        v_blk = jnp.where(row < limit, v_blk, jnp.zeros_like(v_blk))

    # Online (flash) softmax update.
    m_prev = m_scr[...]
    m_new = jnp.maximum(m_prev, jnp.max(s, axis=-1, keepdims=True))
    alpha = jnp.exp(m_prev - m_new)
    p = jnp.exp(s - m_new)

    l_scr[...] = alpha * l_scr[...] + jnp.sum(p, axis=-1, keepdims=True)
    acc_scr[...] = alpha * acc_scr[...] + jnp.dot(
        p.astype(v_blk.dtype), v_blk,
        preferred_element_type=jnp.float32, precision=precision)
    m_scr[...] = m_new

    # Dropout with p == 0.0 is the identity (eval mode) -> nothing to do.

    @pl.when(kv == n_kv - 1)
    def _():
        # Exact reciprocal: approx=True (~1e-3 rel err) broke the accuracy check.
        inv_l = pl.reciprocal(l_scr[...], approx=False)
        o_ref[...] = (acc_scr[...] * inv_l).astype(o_ref.dtype)


def _round_up(x, m):
    return ((x + m - 1) // m) * m


def _sublane(dtype):
    # minimum sublane tile multiple per element width (f32: 8, bf16: 16, int8/fp8: 32)
    return {4: 8, 2: 16, 1: 32}.get(jnp.dtype(dtype).itemsize, 8)


def sdpa(q, k, v, scale_factor, *, tm=None, tk=None):
    """q: (M, D), k: (N, D), v: (N, Dv) -> (M, Dv).  2-D torch.matmul semantics."""
    M, D = q.shape
    N, Dk = k.shape
    Nv, Dv = v.shape
    assert D == Dk and N == Nv

    if tm is None:
        # Up to 256 rows to feed the 256-wide MXU (v6e/v7x); sublane-aligned for small M.
        tm = min(256, _round_up(M, _sublane(q.dtype)))
    if tk is None:
        # Lane-aligned (multiple of 128) KV tile; large enough to amortize the
        # ~0.35us per-grid-step overhead while keeping VMEM use O(tile).
        tk = min(1024, _round_up(N, 128))

    grid = (pl.cdiv(M, tm), pl.cdiv(N, tk))
    mask_kv = (N % tk) != 0

    # f32 inputs: request full-precision MXU passes to match the true-f32 torch
    # reference; bf16/int8 inputs already take the fast native MXU path.
    precision = (lax.Precision.HIGHEST if q.dtype == jnp.float32
                 else lax.Precision.DEFAULT)

    scale = jnp.asarray([scale_factor], dtype=jnp.float32)

    kernel = functools.partial(flash_sdpa_kernel, n_valid=N, mask_kv=mask_kv,
                               precision=precision)

    return pl.pallas_call(
        kernel,
        out_shape=jax.ShapeDtypeStruct((M, Dv), q.dtype),
        grid=grid,
        in_specs=[
            # runtime scalar scale factor lives in SMEM
            pl.BlockSpec(memory_space=pltpu.MemorySpace.SMEM),
            pl.BlockSpec((tm, D), lambda i, j: (i, 0)),
            pl.BlockSpec((tk, D), lambda i, j: (j, 0)),
            pl.BlockSpec((tk, Dv), lambda i, j: (j, 0)),
        ],
        out_specs=pl.BlockSpec((tm, Dv), lambda i, j: (i, 0)),
        scratch_shapes=[
            pltpu.VMEM((tm, 1), jnp.float32),    # running max
            pltpu.VMEM((tm, 1), jnp.float32),    # running sum
            pltpu.VMEM((tm, Dv), jnp.float32),   # output accumulator
        ],
        compiler_params=pltpu.CompilerParams(
            dimension_semantics=("parallel", "arbitrary")),
    )(scale, q, k, v)


def sdpa_reference(q, k, v, scale_factor):
    qk = jnp.matmul(q, k.T, precision=lax.Precision.HIGHEST) * scale_factor
    p = jax.nn.softmax(qk, axis=-1)
    return jnp.matmul(p, v, precision=lax.Precision.HIGHEST)


def _check(q, k, v, scale_factor, **kw):
    out = jax.block_until_ready(sdpa(q, k, v, scale_factor, **kw))
    ref = sdpa_reference(q, k, v, scale_factor)
    assert out.shape == ref.shape
    assert jnp.allclose(out, ref, atol=2e-3, rtol=2e-3), (
        f"mismatch vs reference: max abs err {jnp.max(jnp.abs(out - ref))}")


if __name__ == "__main__":
    # Case 1: the exact tensors from the original PyTorch file.
    q0 = jnp.array([[1.0, 2.0, 5.0]], dtype=jnp.float32)
    k0 = jnp.array([[3.0, 10.0, 7.0], [1.0, 1.0, 3.0], [0.0, -2.0, 4.0]],
                   dtype=jnp.float32)
    v0 = jnp.array([[1.0, 8.0, -1.0], [0.0, 1.0, -3.0], [1.0, 1.0, -1.0]],
                   dtype=jnp.float32)
    _check(q0, k0, v0, 1.0)

    # Case 2: small random shapes, N not a multiple of the KV tile (masking path).
    key = jax.random.PRNGKey(0)
    kq, kk, kv, kq2, kk2, kv2 = jax.random.split(key, 6)
    M, N, D, Dv = 8, 13, 32, 32
    q1 = jax.random.normal(kq, (M, D), dtype=jnp.float32)
    k1 = jax.random.normal(kk, (N, D), dtype=jnp.float32)
    v1 = jax.random.normal(kv, (N, Dv), dtype=jnp.float32)
    _check(q1, k1, v1, 0.125)

    # Case 3: multiple tiles along both grid axes, partial edge blocks on both.
    M2, N2, D2, Dv2 = 40, 200, 32, 32
    q2 = jax.random.normal(kq2, (M2, D2), dtype=jnp.float32)
    k2 = jax.random.normal(kk2, (N2, D2), dtype=jnp.float32)
    v2 = jax.random.normal(kv2, (N2, Dv2), dtype=jnp.float32)
    _check(q2, k2, v2, 0.5, tm=16, tk=128)

    print("KERNEL_OK")
</pallas_src>

<mosaic_0001>
module attributes {stable_mosaic.version = 11 : i64} {
  func.func @flash_sdpa_kernel(%arg0: i32, %arg1: i32, %arg2: memref<1xf32, #tpu.memory_space<smem>>, %arg3: memref<8x3xf32, #tpu.memory_space<vmem>>, %arg4: memref<128x3xf32, #tpu.memory_space<vmem>>, %arg5: memref<128x3xf32, #tpu.memory_space<vmem>>, %arg6: memref<8x3xf32, #tpu.memory_space<vmem>>, %arg7: memref<8x1xf32, #tpu.memory_space<vmem>>, %arg8: memref<8x1xf32, #tpu.memory_space<vmem>>, %arg9: memref<8x3xf32, #tpu.memory_space<vmem>>) attributes {dimension_semantics = [#tpu.dimension_semantics<parallel>, #tpu.dimension_semantics<arbitrary>], iteration_bounds = array<i64: 1, 1>, scalar_prefetch = 0 : i64, scratch_operands = 3 : i64, tpu.core_type = #tpu.core_type<tc>, window_params = [{transform_indices = @transform_0, window_bounds = array<i64: 1>}, {transform_indices = @transform_1, window_bounds = array<i64: 8, 3>}, {transform_indices = @transform_2, window_bounds = array<i64: 128, 3>}, {transform_indices = @transform_3, window_bounds = array<i64: 128, 3>}, {transform_indices = @transform_4, window_bounds = array<i64: 8, 3>}]} {
    %c0_i32 = arith.constant 0 : i32
    %0 = arith.cmpi eq, %arg1, %c0_i32 : i32
    %1 = arith.extui %0 : i1 to i32
    %c0_i32_0 = arith.constant 0 : i32
    %2 = arith.cmpi ne, %1, %c0_i32_0 : i32
    scf.if %2 {
      %cst_26 = arith.constant -1.000000e+30 : f32
      %51 = vector.broadcast %cst_26 : f32 to vector<8x1xf32>
      %c0_27 = arith.constant 0 : index
      %c0_28 = arith.constant 0 : index
      %52 = vector.load %arg7[%c0_27, %c0_28] : memref<8x1xf32, #tpu.memory_space<vmem>>, vector<8x1xf32>
      tpu.vector_store %arg7[%c0_27, %c0_28], %51 {strides = array<i32>} : memref<8x1xf32, #tpu.memory_space<vmem>>, vector<8x1xf32>,
      %cst_29 = arith.constant 0.000000e+00 : f32
      %53 = vector.broadcast %cst_29 : f32 to vector<8x1xf32>
      %c0_30 = arith.constant 0 : index
      %c0_31 = arith.constant 0 : index
      %54 = vector.load %arg8[%c0_30, %c0_31] : memref<8x1xf32, #tpu.memory_space<vmem>>, vector<8x1xf32>
      tpu.vector_store %arg8[%c0_30, %c0_31], %53 {strides = array<i32>} : memref<8x1xf32, #tpu.memory_space<vmem>>, vector<8x1xf32>,
      %cst_32 = arith.constant 0.000000e+00 : f32
      %55 = vector.broadcast %cst_32 : f32 to vector<8x3xf32>
      %c0_33 = arith.constant 0 : index
      %c0_34 = arith.constant 0 : index
      %56 = vector.load %arg9[%c0_33, %c0_34] : memref<8x3xf32, #tpu.memory_space<vmem>>, vector<8x3xf32>
      tpu.vector_store %arg9[%c0_33, %c0_34], %55 {strides = array<i32>} : memref<8x3xf32, #tpu.memory_space<vmem>>, vector<8x3xf32>,
    } else {
    }
    %c0 = arith.constant 0 : index
    %c0_1 = arith.constant 0 : index
    %3 = vector.load %arg3[%c0, %c0_1] : memref<8x3xf32, #tpu.memory_space<vmem>>, vector<8x3xf32>
    %c0_2 = arith.constant 0 : index
    %4 = memref.load %arg2[%c0_2] : memref<1xf32, #tpu.memory_space<smem>>
    %5 = vector.broadcast %4 : f32 to vector<8x3xf32>
    %6 = arith.mulf %3, %5 : vector<8x3xf32>
    %c0_3 = arith.constant 0 : index
    %c0_4 = arith.constant 0 : index
    %7 = vector.load %arg4[%c0_3, %c0_4] : memref<128x3xf32, #tpu.memory_space<vmem>>, vector<128x3xf32>
    %cst = arith.constant dense<0.000000e+00> : vector<8x128xf32>
    %8 = tpu.matmul %6, %7, %cst {dimension_numbers = #tpu.dot_dimension_numbers<[1], [1], [0], [0], [0, 0, 1, 0], [], []>, precision = #tpu.contract_precision<fp32>} : vector<8x3xf32>, vector<128x3xf32>, vector<8x128xf32> -> vector<8x128xf32>
    %c0_5 = arith.constant 0 : index
    %c0_6 = arith.constant 0 : index
    %9 = vector.load %arg5[%c0_5, %c0_6] : memref<128x3xf32, #tpu.memory_space<vmem>>, vector<128x3xf32>
    %c128_i32 = arith.constant 128 : i32
    %10 = arith.muli %arg1, %c128_i32 : i32
    %c3_i32 = arith.constant 3 : i32
    %11 = arith.subi %c3_i32, %10 : i32
    %12 = tpu.iota {dimensions = array<i32: 1>} : vector<1x128xi32>
    %13 = vector.broadcast %11 : i32 to vector<1x128xi32>
    %14 = arith.cmpi slt, %12, %13 : vector<1x128xi32>
    %cst_7 = arith.constant -1.000000e+30 : f32
    %15 = vector.shape_cast %14 : vector<1x128xi1> to vector<1x128xi1>
    %16 = vector.broadcast %15 : vector<1x128xi1> to vector<8x128xi1>
    %17 = vector.broadcast %cst_7 : f32 to vector<8x128xf32>
    %18 = arith.select %16, %8, %17 : vector<8x128xi1>, vector<8x128xf32>
    %19 = tpu.iota {dimensions = array<i32: 0>} : vector<128x1xi32>
    %20 = vector.broadcast %11 : i32 to vector<128x1xi32>
    %21 = arith.cmpi slt, %19, %20 : vector<128x1xi32>
    %cst_8 = arith.constant 0.000000e+00 : f32
    %22 = vector.broadcast %cst_8 : f32 to vector<128x3xf32>
    %23 = vector.shape_cast %21 : vector<128x1xi1> to vector<128x1xi1>
    %24 = vector.broadcast %23 : vector<128x1xi1> to vector<128x3xi1>
    %25 = arith.select %24, %9, %22 : vector<128x3xi1>, vector<128x3xf32>
    %c0_9 = arith.constant 0 : index
    %c0_10 = arith.constant 0 : index
    %26 = vector.load %arg7[%c0_9, %c0_10] : memref<8x1xf32, #tpu.memory_space<vmem>>, vector<8x1xf32>
    %cst_11 = arith.constant dense<0xFF800000> : vector<8xf32>
    %27 = vector.multi_reduction <maximumf>, %18, %cst_11 [1] : vector<8x128xf32> to vector<8xf32>
    %28 = vector.shape_cast %27 : vector<8xf32> to vector<8x1xf32>
    %29 = arith.maximumf %26, %28 : vector<8x1xf32>
    %30 = arith.subf %26, %29 : vector<8x1xf32>
    %31 = math.exp %30 : vector<8x1xf32>
    %32 = vector.broadcast %29 : vector<8x1xf32> to vector<8x128xf32>
    %33 = arith.subf %18, %32 : vector<8x128xf32>
    %34 = math.exp %33 : vector<8x128xf32>
    %c0_12 = arith.constant 0 : index
    %c0_13 = arith.constant 0 : index
    %35 = vector.load %arg8[%c0_12, %c0_13] : memref<8x1xf32, #tpu.memory_space<vmem>>, vector<8x1xf32>
    %36 = arith.mulf %31, %35 : vector<8x1xf32>
    %cst_14 = arith.constant dense<0.000000e+00> : vector<8xf32>
    %37 = vector.multi_reduction <add>, %34, %cst_14 [1] : vector<8x128xf32> to vector<8xf32>
    %38 = vector.shape_cast %37 : vector<8xf32> to vector<8x1xf32>
    %39 = arith.addf %36, %38 : vector<8x1xf32>
    %c0_15 = arith.constant 0 : index
    %c0_16 = arith.constant 0 : index
    %40 = vector.load %arg8[%c0_15, %c0_16] : memref<8x1xf32, #tpu.memory_space<vmem>>, vector<8x1xf32>
    tpu.vector_store %arg8[%c0_15, %c0_16], %39 {strides = array<i32>} : memref<8x1xf32, #tpu.memory_space<vmem>>, vector<8x1xf32>,
    %c0_17 = arith.constant 0 : index
    %c0_18 = arith.constant 0 : index
    %41 = vector.load %arg9[%c0_17, %c0_18] : memref<8x3xf32, #tpu.memory_space<vmem>>, vector<8x3xf32>
    %42 = vector.broadcast %31 : vector<8x1xf32> to vector<8x3xf32>
    %43 = arith.mulf %42, %41 : vector<8x3xf32>
    %cst_19 = arith.constant dense<0.000000e+00> : vector<8x3xf32>
    %44 = tpu.matmul %34, %25, %cst_19 {dimension_numbers = #tpu.dot_dimension_numbers<[1], [0], [0], [1], [0, 0, 1, 1], [], []>, precision = #tpu.contract_precision<fp32>} : vector<8x128xf32>, vector<128x3xf32>, vector<8x3xf32> -> vector<8x3xf32>
    %45 = arith.addf %43, %44 : vector<8x3xf32>
    %c0_20 = arith.constant 0 : index
    %c0_21 = arith.constant 0 : index
    %46 = vector.load %arg9[%c0_20, %c0_21] : memref<8x3xf32, #tpu.memory_space<vmem>>, vector<8x3xf32>
    tpu.vector_store %arg9[%c0_20, %c0_21], %45 {strides = array<i32>} : memref<8x3xf32, #tpu.memory_space<vmem>>, vector<8x3xf32>,
    %c0_22 = arith.constant 0 : index
    %c0_23 = arith.constant 0 : index
    %47 = vector.load %arg7[%c0_22, %c0_23] : memref<8x1xf32, #tpu.memory_space<vmem>>, vector<8x1xf32>
    tpu.vector_store %arg7[%c0_22, %c0_23], %29 {strides = array<i32>} : memref<8x1xf32, #tpu.memory_space<vmem>>, vector<8x1xf32>,
    %c0_i32_24 = arith.constant 0 : i32
    %48 = arith.cmpi eq, %arg1, %c0_i32_24 : i32
    %49 = arith.extui %48 : i1 to i32
    %c0_i32_25 = arith.constant 0 : i32
    %50 = arith.cmpi ne, %49, %c0_i32_25 : i32
    scf.if %50 {
      %c0_26 = arith.constant 0 : index
      %c0_27 = arith.constant 0 : index
      %51 = vector.load %arg8[%c0_26, %c0_27] : memref<8x1xf32, #tpu.memory_space<vmem>>, vector<8x1xf32>
      %52 = tpu.reciprocal %51 : vector<8x1xf32> -> vector<8x1xf32>
      %c0_28 = arith.constant 0 : index
      %c0_29 = arith.constant 0 : index
      %53 = vector.load %arg9[%c0_28, %c0_29] : memref<8x3xf32, #tpu.memory_space<vmem>>, vector<8x3xf32>
      %54 = vector.broadcast %52 : vector<8x1xf32> to vector<8x3xf32>
      %55 = arith.mulf %53, %54 : vector<8x3xf32>
      %c0_30 = arith.constant 0 : index
      %c0_31 = arith.constant 0 : index
      %56 = vector.load %arg6[%c0_30, %c0_31] : memref<8x3xf32, #tpu.memory_space<vmem>>, vector<8x3xf32>
      tpu.vector_store %arg6[%c0_30, %c0_31], %55 {strides = array<i32>} : memref<8x3xf32, #tpu.memory_space<vmem>>, vector<8x3xf32>,
    } else {
    }
    return
  }
  func.func @transform_0(%arg0: i32, %arg1: i32) -> i32 {
    %c0_i32 = arith.constant 0 : i32
    %c0_i32_0 = arith.constant 0 : i32
    return %c0_i32 : i32
  }
  func.func @transform_1(%arg0: i32, %arg1: i32) -> (i32, i32) {
    %c0_i32 = arith.constant 0 : i32
    %c0_i32_0 = arith.constant 0 : i32
    return %arg0, %c0_i32 : i32, i32
  }
  func.func @transform_2(%arg0: i32, %arg1: i32) -> (i32, i32) {
    %c0_i32 = arith.constant 0 : i32
    %c0_i32_0 = arith.constant 0 : i32
    return %arg1, %c0_i32 : i32, i32
  }
  func.func @transform_3(%arg0: i32, %arg1: i32) -> (i32, i32) {
    %c0_i32 = arith.constant 0 : i32
    %c0_i32_0 = arith.constant 0 : i32
    return %arg1, %c0_i32 : i32, i32
  }
  func.func @transform_4(%arg0: i32, %arg1: i32) -> (i32, i32) {
    %c0_i32 = arith.constant 0 : i32
    %c0_i32_0 = arith.constant 0 : i32
    return %arg0, %c0_i32 : i32, i32
  }
}

</mosaic_0001>

<llo_original>
// kernel: tpu_custom_call.1
$region0: #{tpu_custom_call.1}
  #allocation0 [shape = 'u32[]', space=smem, size = 0x4, offset = 0x4, fixed_abs, tag = 'smem constant byte address 0x4 - core index']
  #allocation1 [shape = 'u32[144,128]{1,0:T(1,128)}', space=vmem, size = 0x12000, scoped, tag = 'internal scratch']
  #allocation2 [shape = 'f32[8,1]{1,0:T(8,128)}', space=vmem, size = 0x1000, scoped, tag = 'scratch operand']
  #allocation3 [shape = 'f32[8,1]{1,0:T(8,128)}', space=vmem, size = 0x1000, scoped, tag = 'scratch operand']
  #allocation4 [shape = 'f32[8,3]{1,0:T(8,128)}', space=vmem, size = 0x1000, scoped, tag = 'scratch operand']
  #allocation5 [shape = 'f32[1]{0:T(128)S(6)}', space=smem, size = 0x200, scoped, tag = 'scoped memory for tpu_custom_call.1']
  %s0 = inlined_call_operand.<no memory space> [shape: f32[1], index: 0, kind: input, shape index: {}]
  %s1 = inlined_call_operand.vmem [shape: f32[1,3], index: 1, kind: input, shape index: {}]
  %s2 = inlined_call_operand.vmem [shape: f32[3,3], index: 2, kind: input, shape index: {}]
  %s3 = inlined_call_operand.vmem [shape: f32[3,3], index: 3, kind: input, shape index: {}]
  %s4 = inlined_call_operand.hbm [shape: f32[1,3], index: 4, kind: output, shape index: {}]
  %s5 = sld [smem:[#allocation0]]
  $region34: #{tpu_custom_call.1} parent=0
    _
  %s7 = ssub.s32 1, %s5
  %s8 = scalar_select 0, %s7, %s5
  %9 = sst [smem:[#allocation5]] %s0
  $region1: #{tpu_custom_call.1} parent=0
    #allocation6 [shape = 'u8[4096]{0}', space=vmem, size = 0x1000, scoped, tag = 'output window, operand 0, single buffered']
    #allocation7 [shape = 's32[1]{0}', space=sflag, size = 0x4, scoped, tag = 'scoped memory for tpu_custom_call.1']
    %10 = vsyncpa [#allocation7], 0
    // Predicated region
    $region2: #{tpu_custom_call.1} parent=1 // pred_check
      _
    $region3: #{tpu_custom_call.1} parent=1 // pred_check_branch
      %12 = sbr.rel (0) target = $region5
    $region4: #{tpu_custom_call.1} parent=1 // pred_region
      _
    $region5: #{tpu_custom_call.1} parent=1 // pred_fallthru
      _
    // Predicated region
    $region6: #{tpu_custom_call.1} parent=1 // pred_check
      _
    $region7: #{tpu_custom_call.1} parent=1 // pred_check_branch
      %14 = sbr.rel (0) target = $region9
    $region8: #{tpu_custom_call.1} parent=1 // pred_region
      _
    $region9: #{tpu_custom_call.1} parent=1 // pred_fallthru
      _
    // Predicated region
    $region10: #{tpu_custom_call.1} parent=1 // pred_check
      _
    $region11: #{tpu_custom_call.1} parent=1 // pred_check_branch
      %16 = sbr.rel (0) target = $region13
    $region12: #{tpu_custom_call.1} parent=1 // pred_region
      _
    $region13: #{tpu_custom_call.1} parent=1 // pred_fallthru
      _
    // Predicated region
    $region14: #{tpu_custom_call.1} parent=1 // pred_check
      _
    $region15: #{tpu_custom_call.1} parent=1 // pred_check_branch
      %18 = sbr.rel (0) target = $region17
    $region16: #{tpu_custom_call.1} parent=1 // pred_region
      _
    $region17: #{tpu_custom_call.1} parent=1 // pred_fallthru
      _
    %p19 = scmp.eq.s32.totalorder 0, 0
    // Predicated region
    $region18: #{tpu_custom_call.1} parent=1 // pred_check
      %p20 = pneg %p19
    $region19: #{tpu_custom_call.1} parent=1 // pred_check_branch
      %22 = sbr.rel (%p20) target = $region21
    $region20: #{tpu_custom_call.1} parent=1 // pred_region
      %vm23 = vcmask 7168
      %24 = vst.msk [vmem:[#allocation2] sm:$0xff] %vm23, -1e+30
      %25 = vst.msk [vmem:[#allocation3] sm:$0xff] %vm23, 0.0
      %vm26 = vcmask 23552
      %27 = vst.msk [vmem:[#allocation4] sm:$0xff] %vm26, 0.0
    $region21: #{tpu_custom_call.1} parent=1 // pred_fallthru
      _
    %v28 = vld [vmem:[%s1] sm:$0xff]
    %s29 = sld [smem:[#allocation5]]
    %v30 = vstv %s29
    %v31 = vmul.f32 %v28, %v30
    %v32 = vld [vmem:[%s2] sm:$0xff]
    %v33 = vld [vmem:[%s2 + $0x8] sm:$0xff]
    %v34 = vld [vmem:[%s2 + $0x10] sm:$0xff]
    %v35 = vld [vmem:[%s2 + $0x18] sm:$0xff]
    %v36 = vld [vmem:[%s2 + $0x20] sm:$0xff]
    %v37 = vld [vmem:[%s2 + $0x28] sm:$0xff]
    %v38 = vld [vmem:[%s2 + $0x30] sm:$0xff]
    %v39 = vld [vmem:[%s2 + $0x38] sm:$0xff]
    %v40 = vld [vmem:[%s2 + $0x40] sm:$0xff]
    %v41 = vld [vmem:[%s2 + $0x48] sm:$0xff]
    %v42 = vld [vmem:[%s2 + $0x50] sm:$0xff]
    %v43 = vld [vmem:[%s2 + $0x58] sm:$0xff]
    %v44 = vld [vmem:[%s2 + $0x60] sm:$0xff]
    %v45 = vld [vmem:[%s2 + $0x68] sm:$0xff]
    %v46 = vld [vmem:[%s2 + $0x70] sm:$0xff]
    %v47 = vld [vmem:[%s2 + $0x78] sm:$0xff]
    %vm48 = vcmask 23552
    %v50 = vsel %vm48, %v31, 0
    %v53 = vsel %vm48, %v32, 0
    %v56 = vsel %vm48, %v33, 0
    %v59 = vsel %vm48, %v34, 0
    %v62 = vsel %vm48, %v35, 0
    %v65 = vsel %vm48, %v36, 0
    %v68 = vsel %vm48, %v37, 0
    %v71 = vsel %vm48, %v38, 0
    %v74 = vsel %vm48, %v39, 0
    %v77 = vsel %vm48, %v40, 0
    %v80 = vsel %vm48, %v41, 0
    %v83 = vsel %vm48, %v42, 0
    %v86 = vsel %vm48, %v43, 0
    %v89 = vsel %vm48, %v44, 0
    %v92 = vsel %vm48, %v45, 0
    %v95 = vsel %vm48, %v46, 0
    %v98 = vsel %vm48, %v47, 0
    %100 = vmatprep.subr.mxu0 0.0
    %v101 = vand.u32 %v53, 4294901760
    %102 = vmatpush1.xpose.msra.mxu0 %v101
    %103 = vmatprep.subr.mxu0 0.0
    %v104 = vand.u32 %v56, 4294901760
    %105 = vmatpush1.xpose.msra.mxu0 %v104
    %106 = vmatprep.subr.mxu0 0.0
    %v107 = vand.u32 %v59, 4294901760
    %108 = vmatpush1.xpose.msra.mxu0 %v107
    %109 = vmatprep.subr.mxu0 0.0
    %v110 = vand.u32 %v62, 4294901760
    %111 = vmatpush1.xpose.msra.mxu0 %v110
    %112 = vmatprep.subr.mxu0 0.0
    %v113 = vand.u32 %v65, 4294901760
    %114 = vmatpush1.xpose.msra.mxu0 %v113
    %115 = vmatprep.subr.mxu0 0.0
    %v116 = vand.u32 %v68, 4294901760
    %117 = vmatpush1.xpose.msra.mxu0 %v116
    %118 = vmatprep.subr.mxu0 0.0
    %v119 = vand.u32 %v71, 4294901760
    %120 = vmatpush1.xpose.msra.mxu0 %v119
    %121 = vmatprep.subr.mxu0 0.0
    %v122 = vand.u32 %v74, 4294901760
    %123 = vmatpush1.xpose.msra.mxu0 %v122
    %124 = vmatprep.subr.mxu0 0.0
    %v125 = vand.u32 %v77, 4294901760
    %126 = vmatpush1.xpose.msra.mxu0 %v125
    %127 = vmatprep.subr.mxu0 0.0
    %v128 = vand.u32 %v80, 4294901760
    %129 = vmatpush1.xpose.msra.mxu0 %v128
    %130 = vmatprep.subr.mxu0 0.0
    %v131 = vand.u32 %v83, 4294901760
    %132 = vmatpush1.xpose.msra.mxu0 %v131
    %133 = vmatprep.subr.mxu0 0.0
    %v134 = vand.u32 %v86, 4294901760
    %135 = vmatpush1.xpose.msra.mxu0 %v134
    %136 = vmatprep.subr.mxu0 0.0
    %v137 = vand.u32 %v89, 4294901760
    %138 = vmatpush1.xpose.msra.mxu0 %v137
    %139 = vmatprep.subr.mxu0 0.0
    %v140 = vand.u32 %v92, 4294901760
    %141 = vmatpush1.xpose.msra.mxu0 %v140
    %142 = vmatprep.subr.mxu0 0.0
    %v143 = vand.u32 %v95, 4294901760
    %144 = vmatpush1.xpose.msra.mxu0 %v143
    %145 = vmatprep.subr.mxu0 0.0
    %v146 = vand.u32 %v98, 4294901760
    %147 = vmatpush1.xpose.msra.mxu0 %v146
    %148 = vmatprep.subr.mxu0 0.0
    %149 = vmatpush1.xpose.msra.mxu0 0.0
    %150 = vmatprep.subr.mxu0 0.0
    %151 = vmatpush1.xpose.msra.mxu0 0.0
    %152 = vmatprep.subr.mxu0 0.0
    %153 = vmatpush1.xpose.msra.mxu0 0.0
    %154 = vmatprep.subr.mxu0 0.0
    %155 = vmatpush1.xpose.msra.mxu0 0.0
    %156 = vmatprep.subr.mxu0 0.0
    %157 = vmatpush1.xpose.msra.mxu0 0.0
    %158 = vmatprep.subr.mxu0 0.0
    %159 = vmatpush1.xpose.msra.mxu0 0.0
    %160 = vmatprep.subr.mxu0 0.0
    %161 = vmatpush1.xpose.msra.mxu0 0.0
    %162 = vmatprep.subr.mxu0 0.0
    %163 = vmatpush1.xpose.msra.mxu0 0.0
    %164 = vmatprep.subr.mxu0 0.0
    %165 = vmatpush1.xpose.msra.mxu0 0.0
    %166 = vmatprep.subr.mxu0 0.0
    %167 = vmatpush1.xpose.msra.mxu0 0.0
    %168 = vmatprep.subr.mxu0 0.0
    %169 = vmatpush1.xpose.msra.mxu0 0.0
    %170 = vmatprep.subr.mxu0 0.0
    %171 = vmatpush1.xpose.msra.mxu0 0.0
    %172 = vmatprep.subr.mxu0 0.0
    %173 = vmatpush1.xpose.msra.mxu0 0.0
    %174 = vmatprep.subr.mxu0 0.0
    %175 = vmatpush1.xpose.msra.mxu0 0.0
    %176 = vmatprep.subr.mxu0 0.0
    %177 = vmatpush1.xpose.msra.mxu0 0.0
    %178 = vmatprep.subr.mxu0 0.0
    %179 = vmatpush1.xpose.msra.mxu0 0.0
    %180 = vmatprep.mubr.f32.mxu0 0.0
    %v181 = vand.u32 %v50, 4294901760
    %v182 = vsub.f32 %v50, %v181
    %v183 = vand.u32 %v182, 4294901760
    %v184 = vsub.f32 %v182, %v183
    %v185 = vand.u32 %v184, 4294901760
    %186 = vmatmul.mubr.f32.gmra.mrb[0].mxu0 %v185
    %v187 = vpop.f32.mrb[0].mxu0
    %v188 = vadd.f32 0.0, %v187
    %v189 = vpop.f32.mrb[0].mxu0
    %190 = vdwg.mxu0
    %191 = vmatprep.subr.mxu0 0.0
    %v192 = vand.u32 %v53, 4294901760
    %v193 = vsub.f32 %v53, %v192
    %v194 = vand.u32 %v193, 4294901760
    %v195 = vsub.f32 %v193, %v194
    %v196 = vand.u32 %v195, 4294901760
    %197 = vmatpush1.xpose.msra.mxu0 %v196
    %198 = vmatprep.subr.mxu0 0.0
    %v199 = vand.u32 %v56, 4294901760
    %v200 = vsub.f32 %v56, %v199
    %v201 = vand.u32 %v200, 4294901760
    %v202 = vsub.f32 %v200, %v201
    %v203 = vand.u32 %v202, 4294901760
    %204 = vmatpush1.xpose.msra.mxu0 %v203
    %205 = vmatprep.subr.mxu0 0.0
    %v206 = vand.u32 %v59, 4294901760
    %v207 = vsub.f32 %v59, %v206
    %v208 = vand.u32 %v207, 4294901760
    %v209 = vsub.f32 %v207, %v208
    %v210 = vand.u32 %v209, 4294901760
    %211 = vmatpush1.xpose.msra.mxu0 %v210
    %212 = vmatprep.subr.mxu0 0.0
    %v213 = vand.u32 %v62, 4294901760
    %v214 = vsub.f32 %v62, %v213
    %v215 = vand.u32 %v214, 4294901760
    %v216 = vsub.f32 %v214, %v215
    %v217 = vand.u32 %v216, 4294901760
    %218 = vmatpush1.xpose.msra.mxu0 %v217
    %219 = vmatprep.subr.mxu0 0.0
    %v220 = vand.u32 %v65, 4294901760
    %v221 = vsub.f32 %v65, %v220
    %v222 = vand.u32 %v221, 4294901760
    %v223 = vsub.f32 %v221, %v222
    %v224 = vand.u32 %v223, 4294901760
    %225 = vmatpush1.xpose.msra.mxu0 %v224
    %226 = vmatprep.subr.mxu0 0.0
    %v227 = vand.u32 %v68, 4294901760
    %v228 = vsub.f32 %v68, %v227
    %v229 = vand.u32 %v228, 4294901760
    %v230 = vsub.f32 %v228, %v229
    %v231 = vand.u32 %v230, 4294901760
    %232 = vmatpush1.xpose.msra.mxu0 %v231
    %233 = vmatprep.subr.mxu0 0.0
    %v234 = vand.u32 %v71, 4294901760
    %v235 = vsub.f32 %v71, %v234
    %v236 = vand.u32 %v235, 4294901760
    %v237 = vsub.f32 %v235, %v236
    %v238 = vand.u32 %v237, 4294901760
    %239 = vmatpush1.xpose.msra.mxu0 %v238
    %240 = vmatprep.subr.mxu0 0.0
    %v241 = vand.u32 %v74, 4294901760
    %v242 = vsub.f32 %v74, %v241
    %v243 = vand.u32 %v242, 4294901760
    %v244 = vsub.f32 %v242, %v243
    %v245 = vand.u32 %v244, 4294901760
    %246 = vmatpush1.xpose.msra.mxu0 %v245
    %247 = vmatprep.subr.mxu0 0.0
    %v248 = vand.u32 %v77, 4294901760
    %v249 = vsub.f32 %v77, %v248
    %v250 = vand.u32 %v249, 4294901760
    %v251 = vsub.f32 %v249, %v250
    %v252 = vand.u32 %v251, 4294901760
    %253 = vmatpush1.xpose.msra.mxu0 %v252
    %254 = vmatprep.subr.mxu0 0.0
    %v255 = vand.u32 %v80, 4294901760
    %v256 = vsub.f32 %v80, %v255
    %v257 = vand.u32 %v256, 4294901760
    %v258 = vsub.f32 %v256, %v257
    %v259 = vand.u32 %v258, 4294901760
    %260 = vmatpush1.xpose.msra.mxu0 %v259
    %261 = vmatprep.subr.mxu0 0.0
    %v262 = vand.u32 %v83, 4294901760
    %v263 = vsub.f32 %v83, %v262
    %v264 = vand.u32 %v263, 4294901760
    %v265 = vsub.f32 %v263, %v264
    %v266 = vand.u32 %v265, 4294901760
    %267 = vmatpush1.xpose.msra.mxu0 %v266
    %268 = vmatprep.subr.mxu0 0.0
    %v269 = vand.u32 %v86, 4294901760
    %v270 = vsub.f32 %v86, %v269
    %v271 = vand.u32 %v270, 4294901760
    %v272 = vsub.f32 %v270, %v271
    %v273 = vand.u32 %v272, 4294901760
    %274 = vmatpush1.xpose.msra.mxu0 %v273
    %275 = vmatprep.subr.mxu0 0.0
    %v276 = vand.u32 %v89, 4294901760
    %v277 = vsub.f32 %v89, %v276
    %v278 = vand.u32 %v277, 4294901760
    %v279 = vsub.f32 %v277, %v278
    %v280 = vand.u32 %v279, 4294901760
    %281 = vmatpush1.xpose.msra.mxu0 %v280
    %282 = vmatprep.subr.mxu0 0.0
    %v283 = vand.u32 %v92, 4294901760
    %v284 = vsub.f32 %v92, %v283
    %v285 = vand.u32 %v284, 4294901760
    %v286 = vsub.f32 %v284, %v285
    %v287 = vand.u32 %v286, 4294901760
    %288 = vmatpush1.xpose.msra.mxu0 %v287
    %289 = vmatprep.subr.mxu0 0.0
    %v290 = vand.u32 %v95, 4294901760
    %v291 = vsub.f32 %v95, %v290
    %v292 = vand.u32 %v291, 4294901760
    %v293 = vsub.f32 %v291, %v292
    %v294 = vand.u32 %v293, 4294901760
    %295 = vmatpush1.xpose.msra.mxu0 %v294
    %296 = vmatprep.subr.mxu0 0.0
    %v297 = vand.u32 %v98, 4294901760
    %v298 = vsub.f32 %v98, %v297
    %v299 = vand.u32 %v298, 4294901760
    %v300 = vsub.f32 %v298, %v299
    %v301 = vand.u32 %v300, 4294901760
    %302 = vmatpush1.xpose.msra.mxu0 %v301
    %303 = vmatprep.subr.mxu0 0.0
    %304 = vmatpush1.xpose.msra.mxu0 0.0
    %305 = vmatprep.subr.mxu0 0.0
    %306 = vmatpush1.xpose.msra.mxu0 0.0
    %307 = vmatprep.subr.mxu0 0.0
    %308 = vmatpush1.xpose.msra.mxu0 0.0
    %309 = vmatprep.subr.mxu0 0.0
    %310 = vmatpush1.xpose.msra.mxu0 0.0
    %311 = vmatprep.subr.mxu0 0.0
    %312 = vmatpush1.xpose.msra.mxu0 0.0
    %313 = vmatprep.subr.mxu0 0.0
    %314 = vmatpush1.xpose.msra.mxu0 0.0
    %315 = vmatprep.subr.mxu0 0.0
    %316 = vmatpush1.xpose.msra.mxu0 0.0
    %317 = vmatprep.subr.mxu0 0.0
    %318 = vmatpush1.xpose.msra.mxu0 0.0
    %319 = vmatprep.subr.mxu0 0.0
    %320 = vmatpush1.xpose.msra.mxu0 0.0
    %321 = vmatprep.subr.mxu0 0.0
    %322 = vmatpush1.xpose.msra.mxu0 0.0
    %323 = vmatprep.subr.mxu0 0.0
    %324 = vmatpush1.xpose.msra.mxu0 0.0
    %325 = vmatprep.subr.mxu0 0.0
    %326 = vmatpush1.xpose.msra.mxu0 0.0
    %327 = vmatprep.subr.mxu0 0.0
    %328 = vmatpush1.xpose.msra.mxu0 0.0
    %329 = vmatprep.subr.mxu0 0.0
    %330 = vmatpush1.xpose.msra.mxu0 0.0
    %331 = vmatprep.subr.mxu0 0.0
    %332 = vmatpush1.xpose.msra.mxu0 0.0
    %333 = vmatprep.subr.mxu0 0.0
    %334 = vmatpush1.xpose.msra.mxu0 0.0
    %335 = vmatprep.mubr.f32.mxu0 0.0
    %v336 = vand.u32 %v50, 4294901760
    %337 = vmatmul.mubr.f32.gmra.mrb[0].mxu0 %v336
    %v338 = vpop.f32.mrb[0].mxu0
    %v339 = vadd.f32 %v188, %v338
    %v340 = vpop.f32.mrb[0].mxu0
    %341 = vdwg.mxu0
    %342 = vmatprep.subr.mxu0 0.0
    %v343 = vand.u32 %v53, 4294901760
    %v344 = vsub.f32 %v53, %v343
    %345 = vmatpush1.xpose.msra.mxu0 %v344
    %346 = vmatprep.subr.mxu0 0.0
    %v347 = vand.u32 %v56, 4294901760
    %v348 = vsub.f32 %v56, %v347
    %349 = vmatpush1.xpose.msra.mxu0 %v348
    %350 = vmatprep.subr.mxu0 0.0
    %v351 = vand.u32 %v59, 4294901760
    %v352 = vsub.f32 %v59, %v351
    %353 = vmatpush1.xpose.msra.mxu0 %v352
    %354 = vmatprep.subr.mxu0 0.0
    %v355 = vand.u32 %v62, 4294901760
    %v356 = vsub.f32 %v62, %v355
    %357 = vmatpush1.xpose.msra.mxu0 %v356
    %358 = vmatprep.subr.mxu0 0.0
    %v359 = vand.u32 %v65, 4294901760
    %v360 = vsub.f32 %v65, %v359
    %361 = vmatpush1.xpose.msra.mxu0 %v360
    %362 = vmatprep.subr.mxu0 0.0
    %v363 = vand.u32 %v68, 4294901760
    %v364 = vsub.f32 %v68, %v363
    %365 = vmatpush1.xpose.msra.mxu0 %v364
    %366 = vmatprep.subr.mxu0 0.0
    %v367 = vand.u32 %v71, 4294901760
    %v368 = vsub.f32 %v71, %v367
    %369 = vmatpush1.xpose.msra.mxu0 %v368
    %370 = vmatprep.subr.mxu0 0.0
    %v371 = vand.u32 %v74, 4294901760
    %v372 = vsub.f32 %v74, %v371
    %373 = vmatpush1.xpose.msra.mxu0 %v372
    %374 = vmatprep.subr.mxu0 0.0
    %v375 = vand.u32 %v77, 4294901760
    %v376 = vsub.f32 %v77, %v375
    %377 = vmatpush1.xpose.msra.mxu0 %v376
    %378 = vmatprep.subr.mxu0 0.0
    %v379 = vand.u32 %v80, 4294901760
    %v380 = vsub.f32 %v80, %v379
    %381 = vmatpush1.xpose.msra.mxu0 %v380
    %382 = vmatprep.subr.mxu0 0.0
    %v383 = vand.u32 %v83, 4294901760
    %v384 = vsub.f32 %v83, %v383
    %385 = vmatpush1.xpose.msra.mxu0 %v384
    %386 = vmatprep.subr.mxu0 0.0
    %v387 = vand.u32 %v86, 4294901760
    %v388 = vsub.f32 %v86, %v387
    %389 = vmatpush1.xpose.msra.mxu0 %v388
    %390 = vmatprep.subr.mxu0 0.0
    %v391 = vand.u32 %v89, 4294901760
    %v392 = vsub.f32 %v89, %v391
    %393 = vmatpush1.xpose.msra.mxu0 %v392
    %394 = vmatprep.subr.mxu0 0.0
    %v395 = vand.u32 %v92, 4294901760
    %v396 = vsub.f32 %v92, %v395
    %397 = vmatpush1.xpose.msra.mxu0 %v396
    %398 = vmatprep.subr.mxu0 0.0
    %v399 = vand.u32 %v95, 4294901760
    %v400 = vsub.f32 %v95, %v399
    %401 = vmatpush1.xpose.msra.mxu0 %v400
    %402 = vmatprep.subr.mxu0 0.0
    %v403 = vand.u32 %v98, 4294901760
    %v404 = vsub.f32 %v98, %v403
    %405 = vmatpush1.xpose.msra.mxu0 %v404
    %406 = vmatprep.subr.mxu0 0.0
    %407 = vmatpush1.xpose.msra.mxu0 0.0
    %408 = vmatprep.subr.mxu0 0.0
    %409 = vmatpush1.xpose.msra.mxu0 0.0
    %410 = vmatprep.subr.mxu0 0.0
    %411 = vmatpush1.xpose.msra.mxu0 0.0
    %412 = vmatprep.subr.mxu0 0.0
    %413 = vmatpush1.xpose.msra.mxu0 0.0
    %414 = vmatprep.subr.mxu0 0.0
    %415 = vmatpush1.xpose.msra.mxu0 0.0
    %416 = vmatprep.subr.mxu0 0.0
    %417 = vmatpush1.xpose.msra.mxu0 0.0
    %418 = vmatprep.subr.mxu0 0.0
    %419 = vmatpush1.xpose.msra.mxu0 0.0
    %420 = vmatprep.subr.mxu0 0.0
    %421 = vmatpush1.xpose.msra.mxu0 0.0
    %422 = vmatprep.subr.mxu0 0.0
    %423 = vmatpush1.xpose.msra.mxu0 0.0
    %424 = vmatprep.subr.mxu0 0.0
    %425 = vmatpush1.xpose.msra.mxu0 0.0
    %426 = vmatprep.subr.mxu0 0.0
    %427 = vmatpush1.xpose.msra.mxu0 0.0
    %428 = vmatprep.subr.mxu0 0.0
    %429 = vmatpush1.xpose.msra.mxu0 0.0
    %430 = vmatprep.subr.mxu0 0.0
    %431 = vmatpush1.xpose.msra.mxu0 0.0
    %432 = vmatprep.subr.mxu0 0.0
    %433 = vmatpush1.xpose.msra.mxu0 0.0
    %434 = vmatprep.subr.mxu0 0.0
    %435 = vmatpush1.xpose.msra.mxu0 0.0
    %436 = vmatprep.subr.mxu0 0.0
    %437 = vmatpush1.xpose.msra.mxu0 0.0
    %438 = vmatprep.mubr.f32.mxu0 0.0
    %v439 = vand.u32 %v50, 4294901760
    %v440 = vsub.f32 %v50, %v439
    %441 = vmatmul.mubr.f32.gmra.mrb[0].mxu0 %v440
    %v442 = vpop.f32.mrb[0].mxu0
    %v443 = vadd.f32 %v339, %v442
    %v444 = vpop.f32.mrb[0].mxu0
    %445 = vdwg.mxu0
    %446 = vmatprep.subr.mxu0 0.0
    %v447 = vand.u32 %v53, 4294901760
    %448 = vmatpush1.xpose.msra.mxu0 %v447
    %449 = vmatprep.subr.mxu0 0.0
    %v450 = vand.u32 %v56, 4294901760
    %451 = vmatpush1.xpose.msra.mxu0 %v450
    %452 = vmatprep.subr.mxu0 0.0
    %v453 = vand.u32 %v59, 4294901760
    %454 = vmatpush1.xpose.msra.mxu0 %v453
    %455 = vmatprep.subr.mxu0 0.0
    %v456 = vand.u32 %v62, 4294901760
    %457 = vmatpush1.xpose.msra.mxu0 %v456
    %458 = vmatprep.subr.mxu0 0.0
    %v459 = vand.u32 %v65, 4294901760
    %460 = vmatpush1.xpose.msra.mxu0 %v459
    %461 = vmatprep.subr.mxu0 0.0
    %v462 = vand.u32 %v68, 4294901760
    %463 = vmatpush1.xpose.msra.mxu0 %v462
    %464 = vmatprep.subr.mxu0 0.0
    %v465 = vand.u32 %v71, 4294901760
    %466 = vmatpush1.xpose.msra.mxu0 %v465
    %467 = vmatprep.subr.mxu0 0.0
    %v468 = vand.u32 %v74, 4294901760
    %469 = vmatpush1.xpose.msra.mxu0 %v468
    %470 = vmatprep.subr.mxu0 0.0
    %v471 = vand.u32 %v77, 4294901760
    %472 = vmatpush1.xpose.msra.mxu0 %v471
    %473 = vmatprep.subr.mxu0 0.0
    %v474 = vand.u32 %v80, 4294901760
    %475 = vmatpush1.xpose.msra.mxu0 %v474
    %476 = vmatprep.subr.mxu0 0.0
    %v477 = vand.u32 %v83, 4294901760
    %478 = vmatpush1.xpose.msra.mxu0 %v477
    %479 = vmatprep.subr.mxu0 0.0
    %v480 = vand.u32 %v86, 4294901760
    %481 = vmatpush1.xpose.msra.mxu0 %v480
    %482 = vmatprep.subr.mxu0 0.0
    %v483 = vand.u32 %v89, 4294901760
    %484 = vmatpush1.xpose.msra.mxu0 %v483
    %485 = vmatprep.subr.mxu0 0.0
    %v486 = vand.u32 %v92, 4294901760
    %487 = vmatpush1.xpose.msra.mxu0 %v486
    %488 = vmatprep.subr.mxu0 0.0
    %v489 = vand.u32 %v95, 4294901760
    %490 = vmatpush1.xpose.msra.mxu0 %v489
    %491 = vmatprep.subr.mxu0 0.0
    %v492 = vand.u32 %v98, 4294901760
    %493 = vmatpush1.xpose.msra.mxu0 %v492
    %494 = vmatprep.subr.mxu0 0.0
    %495 = vmatpush1.xpose.msra.mxu0 0.0
    %496 = vmatprep.subr.mxu0 0.0
    %497 = vmatpush1.xpose.msra.mxu0 0.0
    %498 = vmatprep.subr.mxu0 0.0
    %499 = vmatpush1.xpose.msra.mxu0 0.0
    %500 = vmatprep.subr.mxu0 0.0
    %501 = vmatpush1.xpose.msra.mxu0 0.0
    %502 = vmatprep.subr.mxu0 0.0
    %503 = vmatpush1.xpose.msra.mxu0 0.0
    %504 = vmatprep.subr.mxu0 0.0
    %505 = vmatpush1.xpose.msra.mxu0 0.0
    %506 = vmatprep.subr.mxu0 0.0
    %507 = vmatpush1.xpose.msra.mxu0 0.0
    %508 = vmatprep.subr.mxu0 0.0
    %509 = vmatpush1.xpose.msra.mxu0 0.0
    %510 = vmatprep.subr.mxu0 0.0
    %511 = vmatpush1.xpose.msra.mxu0 0.0
    %512 = vmatprep.subr.mxu0 0.0
    %513 = vmatpush1.xpose.msra.mxu0 0.0
    %514 = vmatprep.subr.mxu0 0.0
    %515 = vmatpush1.xpose.msra.mxu0 0.0
    %516 = vmatprep.subr.mxu0 0.0
    %517 = vmatpush1.xpose.msra.mxu0 0.0
    %518 = vmatprep.subr.mxu0 0.0
    %519 = vmatpush1.xpose.msra.mxu0 0.0
    %520 = vmatprep.subr.mxu0 0.0
    %521 = vmatpush1.xpose.msra.mxu0 0.0
    %522 = vmatprep.subr.mxu0 0.0
    %523 = vmatpush1.xpose.msra.mxu0 0.0
    %524 = vmatprep.subr.mxu0 0.0
    %525 = vmatpush1.xpose.msra.mxu0 0.0
    %526 = vmatprep.mubr.f32.mxu0 0.0
    %v527 = vand.u32 %v50, 4294901760
    %v528 = vsub.f32 %v50, %v527
    %v529 = vand.u32 %v528, 4294901760
    %530 = vmatmul.mubr.f32.gmra.mrb[0].mxu0 %v529
    %v531 = vpop.f32.mrb[0].mxu0
    %v532 = vadd.f32 %v443, %v531
    %v533 = vpop.f32.mrb[0].mxu0
    %534 = vdwg.mxu0
    %535 = vmatprep.subr.mxu0 0.0
    %v536 = vand.u32 %v53, 4294901760
    %v537 = vsub.f32 %v53, %v536
    %v538 = vand.u32 %v537, 4294901760
    %539 = vmatpush1.xpose.msra.mxu0 %v538
    %540 = vmatprep.subr.mxu0 0.0
    %v541 = vand.u32 %v56, 4294901760
    %v542 = vsub.f32 %v56, %v541
    %v543 = vand.u32 %v542, 4294901760
    %544 = vmatpush1.xpose.msra.mxu0 %v543
    %545 = vmatprep.subr.mxu0 0.0
    %v546 = vand.u32 %v59, 4294901760
    %v547 = vsub.f32 %v59, %v546
    %v548 = vand.u32 %v547, 4294901760
    %549 = vmatpush1.xpose.msra.mxu0 %v548
    %550 = vmatprep.subr.mxu0 0.0
    %v551 = vand.u32 %v62, 4294901760
    %v552 = vsub.f32 %v62, %v551
    %v553 = vand.u32 %v552, 4294901760
    %554 = vmatpush1.xpose.msra.mxu0 %v553
    %555 = vmatprep.subr.mxu0 0.0
    %v556 = vand.u32 %v65, 4294901760
    %v557 = vsub.f32 %v65, %v556
    %v558 = vand.u32 %v557, 4294901760
    %559 = vmatpush1.xpose.msra.mxu0 %v558
    %560 = vmatprep.subr.mxu0 0.0
    %v561 = vand.u32 %v68, 4294901760
    %v562 = vsub.f32 %v68, %v561
    %v563 = vand.u32 %v562, 4294901760
    %564 = vmatpush1.xpose.msra.mxu0 %v563
    %565 = vmatprep.subr.mxu0 0.0
    %v566 = vand.u32 %v71, 4294901760
    %v567 = vsub.f32 %v71, %v566
    %v568 = vand.u32 %v567, 4294901760
    %569 = vmatpush1.xpose.msra.mxu0 %v568
    %570 = vmatprep.subr.mxu0 0.0
    %v571 = vand.u32 %v74, 4294901760
    %v572 = vsub.f32 %v74, %v571
    %v573 = vand.u32 %v572, 4294901760
    %574 = vmatpush1.xpose.msra.mxu0 %v573
    %575 = vmatprep.subr.mxu0 0.0
    %v576 = vand.u32 %v77, 4294901760
    %v577 = vsub.f32 %v77, %v576
    %v578 = vand.u32 %v577, 4294901760
    %579 = vmatpush1.xpose.msra.mxu0 %v578
    %580 = vmatprep.subr.mxu0 0.0
    %v581 = vand.u32 %v80, 4294901760
    %v582 = vsub.f32 %v80, %v581
    %v583 = vand.u32 %v582, 4294901760
    %584 = vmatpush1.xpose.msra.mxu0 %v583
    %585 = vmatprep.subr.mxu0 0.0
    %v586 = vand.u32 %v83, 4294901760
    %v587 = vsub.f32 %v83, %v586
    %v588 = vand.u32 %v587, 4294901760
    %589 = vmatpush1.xpose.msra.mxu0 %v588
    %590 = vmatprep.subr.mxu0 0.0
    %v591 = vand.u32 %v86, 4294901760
    %v592 = vsub.f32 %v86, %v591
    %v593 = vand.u32 %v592, 4294901760
    %594 = vmatpush1.xpose.msra.mxu0 %v593
    %595 = vmatprep.subr.mxu0 0.0
    %v596 = vand.u32 %v89, 4294901760
    %v597 = vsub.f32 %v89, %v596
    %v598 = vand.u32 %v597, 4294901760
    %599 = vmatpush1.xpose.msra.mxu0 %v598
    %600 = vmatprep.subr.mxu0 0.0
    %v601 = vand.u32 %v92, 4294901760
    %v602 = vsub.f32 %v92, %v601
    %v603 = vand.u32 %v602, 4294901760
    %604 = vmatpush1.xpose.msra.mxu0 %v603
    %605 = vmatprep.subr.mxu0 0.0
    %v606 = vand.u32 %v95, 4294901760
    %v607 = vsub.f32 %v95, %v606
    %v608 = vand.u32 %v607, 4294901760
    %609 = vmatpush1.xpose.msra.mxu0 %v608
    %610 = vmatprep.subr.mxu0 0.0
    %v611 = vand.u32 %v98, 4294901760
    %v612 = vsub.f32 %v98, %v611
    %v613 = vand.u32 %v612, 4294901760
    %614 = vmatpush1.xpose.msra.mxu0 %v613
    %615 = vmatprep.subr.mxu0 0.0
    %616 = vmatpush1.xpose.msra.mxu0 0.0
    %617 = vmatprep.subr.mxu0 0.0
    %618 = vmatpush1.xpose.msra.mxu0 0.0
    %619 = vmatprep.subr.mxu0 0.0
    %620 = vmatpush1.xpose.msra.mxu0 0.0
    %621 = vmatprep.subr.mxu0 0.0
    %622 = vmatpush1.xpose.msra.mxu0 0.0
    %623 = vmatprep.subr.mxu0 0.0
    %624 = vmatpush1.xpose.msra.mxu0 0.0
    %625 = vmatprep.subr.mxu0 0.0
    %626 = vmatpush1.xpose.msra.mxu0 0.0
    %627 = vmatprep.subr.mxu0 0.0
    %628 = vmatpush1.xpose.msra.mxu0 0.0
    %629 = vmatprep.subr.mxu0 0.0
    %630 = vmatpush1.xpose.msra.mxu0 0.0
    %631 = vmatprep.subr.mxu0 0.0
    %632 = vmatpush1.xpose.msra.mxu0 0.0
    %633 = vmatprep.subr.mxu0 0.0
    %634 = vmatpush1.xpose.msra.mxu0 0.0
    %635 = vmatprep.subr.mxu0 0.0
    %636 = vmatpush1.xpose.msra.mxu0 0.0
    %637 = vmatprep.subr.mxu0 0.0
    %638 = vmatpush1.xpose.msra.mxu0 0.0
    %639 = vmatprep.subr.mxu0 0.0
    %640 = vmatpush1.xpose.msra.mxu0 0.0
    %641 = vmatprep.subr.mxu0 0.0
    %642 = vmatpush1.xpose.msra.mxu0 0.0
    %643 = vmatprep.subr.mxu0 0.0
    %644 = vmatpush1.xpose.msra.mxu0 0.0
    %645 = vmatprep.subr.mxu0 0.0
    %646 = vmatpush1.xpose.msra.mxu0 0.0
    %647 = vmatprep.mubr.f32.mxu0 0.0
    %v648 = vand.u32 %v50, 4294901760
    %649 = vmatmul.mubr.f32.gmra.mrb[0].mxu0 %v648
    %v650 = vpop.f32.mrb[0].mxu0
    %v651 = vadd.f32 %v532, %v650
    %v652 = vpop.f32.mrb[0].mxu0
    %653 = vdwg.mxu0
    %654 = vmatprep.subr.mxu0 0.0
    %v655 = vand.u32 %v53, 4294901760
    %656 = vmatpush1.xpose.msra.mxu0 %v655
    %657 = vmatprep.subr.mxu0 0.0
    %v658 = vand.u32 %v56, 4294901760
    %659 = vmatpush1.xpose.msra.mxu0 %v658
    %660 = vmatprep.subr.mxu0 0.0
    %v661 = vand.u32 %v59, 4294901760
    %662 = vmatpush1.xpose.msra.mxu0 %v661
    %663 = vmatprep.subr.mxu0 0.0
    %v664 = vand.u32 %v62, 4294901760
    %665 = vmatpush1.xpose.msra.mxu0 %v664
    %666 = vmatprep.subr.mxu0 0.0
    %v667 = vand.u32 %v65, 4294901760
    %668 = vmatpush1.xpose.msra.mxu0 %v667
    %669 = vmatprep.subr.mxu0 0.0
    %v670 = vand.u32 %v68, 4294901760
    %671 = vmatpush1.xpose.msra.mxu0 %v670
    %672 = vmatprep.subr.mxu0 0.0
    %v673 = vand.u32 %v71, 4294901760
    %674 = vmatpush1.xpose.msra.mxu0 %v673
    %675 = vmatprep.subr.mxu0 0.0
    %v676 = vand.u32 %v74, 4294901760
    %677 = vmatpush1.xpose.msra.mxu0 %v676
    %678 = vmatprep.subr.mxu0 0.0
    %v679 = vand.u32 %v77, 4294901760
    %680 = vmatpush1.xpose.msra.mxu0 %v679
    %681 = vmatprep.subr.mxu0 0.0
    %v682 = vand.u32 %v80, 4294901760
    %683 = vmatpush1.xpose.msra.mxu0 %v682
    %684 = vmatprep.subr.mxu0 0.0
    %v685 = vand.u32 %v83, 4294901760
    %686 = vmatpush1.xpose.msra.mxu0 %v685
    %687 = vmatprep.subr.mxu0 0.0
    %v688 = vand.u32 %v86, 4294901760
    %689 = vmatpush1.xpose.msra.mxu0 %v688
    %690 = vmatprep.subr.mxu0 0.0
    %v691 = vand.u32 %v89, 4294901760
    %692 = vmatpush1.xpose.msra.mxu0 %v691
    %693 = vmatprep.subr.mxu0 0.0
    %v694 = vand.u32 %v92, 4294901760
    %695 = vmatpush1.xpose.msra.mxu0 %v694
    %696 = vmatprep.subr.mxu0 0.0
    %v697 = vand.u32 %v95, 4294901760
    %698 = vmatpush1.xpose.msra.mxu0 %v697
    %699 = vmatprep.subr.mxu0 0.0
    %v700 = vand.u32 %v98, 4294901760
    %701 = vmatpush1.xpose.msra.mxu0 %v700
    %702 = vmatprep.subr.mxu0 0.0
    %703 = vmatpush1.xpose.msra.mxu0 0.0
    %704 = vmatprep.subr.mxu0 0.0
    %705 = vmatpush1.xpose.msra.mxu0 0.0
    %706 = vmatprep.subr.mxu0 0.0
    %707 = vmatpush1.xpose.msra.mxu0 0.0
    %708 = vmatprep.subr.mxu0 0.0
    %709 = vmatpush1.xpose.msra.mxu0 0.0
    %710 = vmatprep.subr.mxu0 0.0
    %711 = vmatpush1.xpose.msra.mxu0 0.0
    %712 = vmatprep.subr.mxu0 0.0
    %713 = vmatpush1.xpose.msra.mxu0 0.0
    %714 = vmatprep.subr.mxu0 0.0
    %715 = vmatpush1.xpose.msra.mxu0 0.0
    %716 = vmatprep.subr.mxu0 0.0
    %717 = vmatpush1.xpose.msra.mxu0 0.0
    %718 = vmatprep.subr.mxu0 0.0
    %719 = vmatpush1.xpose.msra.mxu0 0.0
    %720 = vmatprep.subr.mxu0 0.0
    %721 = vmatpush1.xpose.msra.mxu0 0.0
    %722 = vmatprep.subr.mxu0 0.0
    %723 = vmatpush1.xpose.msra.mxu0 0.0
    %724 = vmatprep.subr.mxu0 0.0
    %725 = vmatpush1.xpose.msra.mxu0 0.0
    %726 = vmatprep.subr.mxu0 0.0
    %727 = vmatpush1.xpose.msra.mxu0 0.0
    %728 = vmatprep.subr.mxu0 0.0
    %729 = vmatpush1.xpose.msra.mxu0 0.0
    %730 = vmatprep.subr.mxu0 0.0
    %731 = vmatpush1.xpose.msra.mxu0 0.0
    %732 = vmatprep.subr.mxu0 0.0
    %733 = vmatpush1.xpose.msra.mxu0 0.0
    %734 = vmatprep.mubr.f32.mxu0 0.0
    %v735 = vand.u32 %v50, 4294901760
    %736 = vmatmul.mubr.f32.gmra.mrb[0].mxu0 %v735
    %v737 = vpop.f32.mrb[0].mxu0
    %v738 = vadd.f32 %v651, %v737
    %v739 = vpop.f32.mrb[0].mxu0
    %740 = vdwg.mxu0
    %v741 = vld [vmem:[%s3] sm:$0xff]
    %v742 = vld [vmem:[%s3 + $0x8] sm:$0xff]
    %v743 = vld [vmem:[%s3 + $0x10] sm:$0xff]
    %v744 = vld [vmem:[%s3 + $0x18] sm:$0xff]
    %v745 = vld [vmem:[%s3 + $0x20] sm:$0xff]
    %v746 = vld [vmem:[%s3 + $0x28] sm:$0xff]
    %v747 = vld [vmem:[%s3 + $0x30] sm:$0xff]
    %v748 = vld [vmem:[%s3 + $0x38] sm:$0xff]
    %v749 = vld [vmem:[%s3 + $0x40] sm:$0xff]
    %v750 = vld [vmem:[%s3 + $0x48] sm:$0xff]
    %v751 = vld [vmem:[%s3 + $0x50] sm:$0xff]
    %v752 = vld [vmem:[%s3 + $0x58] sm:$0xff]
    %v753 = vld [vmem:[%s3 + $0x60] sm:$0xff]
    %v754 = vld [vmem:[%s3 + $0x68] sm:$0xff]
    %v755 = vld [vmem:[%s3 + $0x70] sm:$0xff]
    %v756 = vld [vmem:[%s3 + $0x78] sm:$0xff]
    %s757 = smul.u32 0, 128
    %s758 = ssub.s32 3, %s757
    %v759 = vlaneseq
    %v760 = vand.u32 %v759, 127
    %v761 = vstv %s758
    %vm762 = vcmp.lt.s32.totalorder %v760, %v761
    %v763 = vsel %vm762, 1, 0
    %vm764 = vcmp.eq.s32.totalorder %v763, 1
    %v765 = vsel %vm764, %v738, -1e+30
    %v766 = vlaneseq
    %v767 = vshrl.u32 %v766, 7
    %v768 = vadd.s32 %v767, 8
    %v769 = vadd.s32 %v767, 16
    %v770 = vadd.s32 %v767, 24
    %v771 = vadd.s32 %v767, 32
    %v772 = vadd.s32 %v767, 40
    %v773 = vadd.s32 %v767, 48
    %v774 = vadd.s32 %v767, 56
    %v775 = vadd.s32 %v767, 64
    %v776 = vadd.s32 %v767, 72
    %v777 = vadd.s32 %v767, 80
    %v778 = vadd.s32 %v767, 88
    %v779 = vadd.s32 %v767, 96
    %v780 = vadd.s32 %v767, 104
    %v781 = vadd.s32 %v767, 112
    %v782 = vadd.s32 %v767, 120
    %vm783 = vcmp.lt.s32.totalorder %v767, %v761
    %vm784 = vcmp.lt.s32.totalorder %v768, %v761
    %vm785 = vcmp.lt.s32.totalorder %v769, %v761
    %vm786 = vcmp.lt.s32.totalorder %v770, %v761
    %vm787 = vcmp.lt.s32.totalorder %v771, %v761
    %vm788 = vcmp.lt.s32.totalorder %v772, %v761
    %vm789 = vcmp.lt.s32.totalorder %v773, %v761
    %vm790 = vcmp.lt.s32.totalorder %v774, %v761
    %vm791 = vcmp.lt.s32.totalorder %v775, %v761
    %vm792 = vcmp.lt.s32.totalorder %v776, %v761
    %vm793 = vcmp.lt.s32.totalorder %v777, %v761
    %vm794 = vcmp.lt.s32.totalorder %v778, %v761
    %vm795 = vcmp.lt.s32.totalorder %v779, %v761
    %vm796 = vcmp.lt.s32.totalorder %v780, %v761
    %vm797 = vcmp.lt.s32.totalorder %v781, %v761
    %vm798 = vcmp.lt.s32.totalorder %v782, %v761
    %v799 = vsel %vm783, 1, 0
    %v800 = vsel %vm784, 1, 0
    %v801 = vsel %vm785, 1, 0
    %v802 = vsel %vm786, 1, 0
    %v803 = vsel %vm787, 1, 0
    %v804 = vsel %vm788, 1, 0
    %v805 = vsel %vm789, 1, 0
    %v806 = vsel %vm790, 1, 0
    %v807 = vsel %vm791, 1, 0
    %v808 = vsel %vm792, 1, 0
    %v809 = vsel %vm793, 1, 0
    %v810 = vsel %vm794, 1, 0
    %v811 = vsel %vm795, 1, 0
    %v812 = vsel %vm796, 1, 0
    %v813 = vsel %vm797, 1, 0
    %v814 = vsel %vm798, 1, 0
    %vm815 = vcmp.eq.s32.totalorder %v799, 1
    %vm816 = vcmp.eq.s32.totalorder %v800, 1
    %vm817 = vcmp.eq.s32.totalorder %v801, 1
    %vm818 = vcmp.eq.s32.totalorder %v802, 1
    %vm819 = vcmp.eq.s32.totalorder %v803, 1
    %vm820 = vcmp.eq.s32.totalorder %v804, 1
    %vm821 = vcmp.eq.s32.totalorder %v805, 1
    %vm822 = vcmp.eq.s32.totalorder %v806, 1
    %vm823 = vcmp.eq.s32.totalorder %v807, 1
    %vm824 = vcmp.eq.s32.totalorder %v808, 1
    %vm825 = vcmp.eq.s32.totalorder %v809, 1
    %vm826 = vcmp.eq.s32.totalorder %v810, 1
    %vm827 = vcmp.eq.s32.totalorder %v811, 1
    %vm828 = vcmp.eq.s32.totalorder %v812, 1
    %vm829 = vcmp.eq.s32.totalorder %v813, 1
    %vm830 = vcmp.eq.s32.totalorder %v814, 1
    %v831 = vsel %vm815, %v741, 0.0
    %v832 = vsel %vm816, %v742, 0.0
    %v833 = vsel %vm817, %v743, 0.0
    %v834 = vsel %vm818, %v744, 0.0
    %v835 = vsel %vm819, %v745, 0.0
    %v836 = vsel %vm820, %v746, 0.0
    %v837 = vsel %vm821, %v747, 0.0
    %v838 = vsel %vm822, %v748, 0.0
    %v839 = vsel %vm823, %v749, 0.0
    %v840 = vsel %vm824, %v750, 0.0
    %v841 = vsel %vm825, %v751, 0.0
    %v842 = vsel %vm826, %v752, 0.0
    %v843 = vsel %vm827, %v753, 0.0
    %v844 = vsel %vm828, %v754, 0.0
    %v845 = vsel %vm829, %v755, 0.0
    %v846 = vsel %vm830, %v756, 0.0
    %v847 = vld [vmem:[#allocation2] sm:$0xff]
    %848 = vmax.xlane.f32.xlu0 %v765
    %v849 = vpop.xlane.xlu0 %848
    %v850 = vmax.f32 %v847, %v849
    %v851 = vsub.f32 %v847, %v850
    %v852 = vmul.f32 %v851, 1.442695
    %v853 = vpow.pop %v852
    %855 = vset.pattern.permute.xlu0 0
    %856 = vperm.xlu0 %855, %v850
    %v857 = vpop.permute.xlu0 %856
    %v859 = vsub.f32 %v765, %v857
    %v860 = vmul.f32 %v859, 1.442695
    %v861 = vpow.pop %v860
    %v862 = vld [vmem:[#allocation3] sm:$0xff]
    %v863 = vmul.f32 %v853, %v862
    %864 = vadd.xlane.f32.xlu0 %v861
    %v865 = vpop.xlane.xlu0 %864
    %v866 = vadd.f32 %v863, %v865
    %vm867 = vcmask 7168
    %868 = vst.msk [vmem:[#allocation3] sm:$0xff] %vm867, %v866
    %v869 = vld [vmem:[#allocation4] sm:$0xff]
    %871 = vset.pattern.permute.xlu0 0
    %872 = vperm.xlu0 %871, %v853
    %v873 = vpop.permute.xlu0 %872
    %v875 = vmul.f32 %v873, %v869
    %876 = vmatprep.subr.mxu0 0.0
    %v877 = vand.u32 %v831, 4294901760
    %878 = vmatpush1.msra.mxu0 %v877
    %879 = vmatprep.subr.mxu0 0.0
    %v880 = vand.u32 %v832, 4294901760
    %881 = vmatpush1.msra.mxu0 %v880
    %882 = vmatprep.subr.mxu0 0.0
    %v883 = vand.u32 %v833, 4294901760
    %884 = vmatpush1.msra.mxu0 %v883
    %885 = vmatprep.subr.mxu0 0.0
    %v886 = vand.u32 %v834, 4294901760
    %887 = vmatpush1.msra.mxu0 %v886
    %888 = vmatprep.subr.mxu0 0.0
    %v889 = vand.u32 %v835, 4294901760
    %890 = vmatpush1.msra.mxu0 %v889
    %891 = vmatprep.subr.mxu0 0.0
    %v892 = vand.u32 %v836, 4294901760
    %893 = vmatpush1.msra.mxu0 %v892
    %894 = vmatprep.subr.mxu0 0.0
    %v895 = vand.u32 %v837, 4294901760
    %896 = vmatpush1.msra.mxu0 %v895
    %897 = vmatprep.subr.mxu0 0.0
    %v898 = vand.u32 %v838, 4294901760
    %899 = vmatpush1.msra.mxu0 %v898
    %900 = vmatprep.subr.mxu0 0.0
    %v901 = vand.u32 %v839, 4294901760
    %902 = vmatpush1.msra.mxu0 %v901
    %903 = vmatprep.subr.mxu0 0.0
    %v904 = vand.u32 %v840, 4294901760
    %905 = vmatpush1.msra.mxu0 %v904
    %906 = vmatprep.subr.mxu0 0.0
    %v907 = vand.u32 %v841, 4294901760
    %908 = vmatpush1.msra.mxu0 %v907
    %909 = vmatprep.subr.mxu0 0.0
    %v910 = vand.u32 %v842, 4294901760
    %911 = vmatpush1.msra.mxu0 %v910
    %912 = vmatprep.subr.mxu0 0.0
    %v913 = vand.u32 %v843, 4294901760
    %914 = vmatpush1.msra.mxu0 %v913
    %915 = vmatprep.subr.mxu0 0.0
    %v916 = vand.u32 %v844, 4294901760
    %917 = vmatpush1.msra.mxu0 %v916
    %918 = vmatprep.subr.mxu0 0.0
    %v919 = vand.u32 %v845, 4294901760
    %920 = vmatpush1.msra.mxu0 %v919
    %921 = vmatprep.subr.mxu0 0.0
    %v922 = vand.u32 %v846, 4294901760
    %923 = vmatpush1.msra.mxu0 %v922
    %924 = vmatprep.subr.mxu0 0.0
    %925 = vmatpush1.msra.mxu0 0.0
    %926 = vmatprep.subr.mxu0 0.0
    %927 = vmatpush1.msra.mxu0 0.0
    %928 = vmatprep.subr.mxu0 0.0
    %929 = vmatpush1.msra.mxu0 0.0
    %930 = vmatprep.subr.mxu0 0.0
    %931 = vmatpush1.msra.mxu0 0.0
    %932 = vmatprep.subr.mxu0 0.0
    %933 = vmatpush1.msra.mxu0 0.0
    %934 = vmatprep.subr.mxu0 0.0
    %935 = vmatpush1.msra.mxu0 0.0
    %936 = vmatprep.subr.mxu0 0.0
    %937 = vmatpush1.msra.mxu0 0.0
    %938 = vmatprep.subr.mxu0 0.0
    %939 = vmatpush1.msra.mxu0 0.0
    %940 = vmatprep.subr.mxu0 0.0
    %941 = vmatpush1.msra.mxu0 0.0
    %942 = vmatprep.subr.mxu0 0.0
    %943 = vmatpush1.msra.mxu0 0.0
    %944 = vmatprep.subr.mxu0 0.0
    %945 = vmatpush1.msra.mxu0 0.0
    %946 = vmatprep.subr.mxu0 0.0
    %947 = vmatpush1.msra.mxu0 0.0
    %948 = vmatprep.subr.mxu0 0.0
    %949 = vmatpush1.msra.mxu0 0.0
    %950 = vmatprep.subr.mxu0 0.0
    %951 = vmatpush1.msra.mxu0 0.0
    %952 = vmatprep.subr.mxu0 0.0
    %953 = vmatpush1.msra.mxu0 0.0
    %954 = vmatprep.subr.mxu0 0.0
    %955 = vmatpush1.msra.mxu0 0.0
    %956 = vmatprep.mubr.f32.mxu0 0.0
    %v957 = vand.u32 %v861, 4294901760
    %v958 = vsub.f32 %v861, %v957
    %v959 = vand.u32 %v958, 4294901760
    %v960 = vsub.f32 %v958, %v959
    %v961 = vand.u32 %v960, 4294901760
    %962 = vmatmul.mubr.f32.gmra.mrb[0].mxu0 %v961
    %v963 = vpop.f32.mrb[0].mxu0
    %v964 = vadd.f32 0.0, %v963
    %v965 = vpop.f32.mrb[0].mxu0
    %966 = vdwg.mxu0
    %967 = vmatprep.subr.mxu0 0.0
    %v968 = vand.u32 %v831, 4294901760
    %v969 = vsub.f32 %v831, %v968
    %v970 = vand.u32 %v969, 4294901760
    %v971 = vsub.f32 %v969, %v970
    %v972 = vand.u32 %v971, 4294901760
    %973 = vmatpush1.msra.mxu0 %v972
    %974 = vmatprep.subr.mxu0 0.0
    %v975 = vand.u32 %v832, 4294901760
    %v976 = vsub.f32 %v832, %v975
    %v977 = vand.u32 %v976, 4294901760
    %v978 = vsub.f32 %v976, %v977
    %v979 = vand.u32 %v978, 4294901760
    %980 = vmatpush1.msra.mxu0 %v979
    %981 = vmatprep.subr.mxu0 0.0
    %v982 = vand.u32 %v833, 4294901760
    %v983 = vsub.f32 %v833, %v982
    %v984 = vand.u32 %v983, 4294901760
    %v985 = vsub.f32 %v983, %v984
    %v986 = vand.u32 %v985, 4294901760
    %987 = vmatpush1.msra.mxu0 %v986
    %988 = vmatprep.subr.mxu0 0.0
    %v989 = vand.u32 %v834, 4294901760
    %v990 = vsub.f32 %v834, %v989
    %v991 = vand.u32 %v990, 4294901760
    %v992 = vsub.f32 %v990, %v991
    %v993 = vand.u32 %v992, 4294901760
    %994 = vmatpush1.msra.mxu0 %v993
    %995 = vmatprep.subr.mxu0 0.0
    %v996 = vand.u32 %v835, 4294901760
    %v997 = vsub.f32 %v835, %v996
    %v998 = vand.u32 %v997, 4294901760
    %v999 = vsub.f32 %v997, %v998
    %v1000 = vand.u32 %v999, 4294901760
    %1001 = vmatpush1.msra.mxu0 %v1000
    %1002 = vmatprep.subr.mxu0 0.0
    %v1003 = vand.u32 %v836, 4294901760
    %v1004 = vsub.f32 %v836, %v1003
    %v1005 = vand.u32 %v1004, 4294901760
    %v1006 = vsub.f32 %v1004, %v1005
    %v1007 = vand.u32 %v1006, 4294901760
    %1008 = vmatpush1.msra.mxu0 %v1007
    %1009 = vmatprep.subr.mxu0 0.0
    %v1010 = vand.u32 %v837, 4294901760
    %v1011 = vsub.f32 %v837, %v1010
    %v1012 = vand.u32 %v1011, 4294901760
    %v1013 = vsub.f32 %v1011, %v1012
    %v1014 = vand.u32 %v1013, 4294901760
    %1015 = vmatpush1.msra.mxu0 %v1014
    %1016 = vmatprep.subr.mxu0 0.0
    %v1017 = vand.u32 %v838, 4294901760
    %v1018 = vsub.f32 %v838, %v1017
    %v1019 = vand.u32 %v1018, 4294901760
    %v1020 = vsub.f32 %v1018, %v1019
    %v1021 = vand.u32 %v1020, 4294901760
    %1022 = vmatpush1.msra.mxu0 %v1021
    %1023 = vmatprep.subr.mxu0 0.0
    %v1024 = vand.u32 %v839, 4294901760
    %v1025 = vsub.f32 %v839, %v1024
    %v1026 = vand.u32 %v1025, 4294901760
    %v1027 = vsub.f32 %v1025, %v1026
    %v1028 = vand.u32 %v1027, 4294901760
    %1029 = vmatpush1.msra.mxu0 %v1028
    %1030 = vmatprep.subr.mxu0 0.0
    %v1031 = vand.u32 %v840, 4294901760
    %v1032 = vsub.f32 %v840, %v1031
    %v1033 = vand.u32 %v1032, 4294901760
    %v1034 = vsub.f32 %v1032, %v1033
    %v1035 = vand.u32 %v1034, 4294901760
    %1036 = vmatpush1.msra.mxu0 %v1035
    %1037 = vmatprep.subr.mxu0 0.0
    %v1038 = vand.u32 %v841, 4294901760
    %v1039 = vsub.f32 %v841, %v1038
    %v1040 = vand.u32 %v1039, 4294901760
    %v1041 = vsub.f32 %v1039, %v1040
    %v1042 = vand.u32 %v1041, 4294901760
    %1043 = vmatpush1.msra.mxu0 %v1042
    %1044 = vmatprep.subr.mxu0 0.0
    %v1045 = vand.u32 %v842, 4294901760
    %v1046 = vsub.f32 %v842, %v1045
    %v1047 = vand.u32 %v1046, 4294901760
    %v1048 = vsub.f32 %v1046, %v1047
    %v1049 = vand.u32 %v1048, 4294901760
    %1050 = vmatpush1.msra.mxu0 %v1049
    %1051 = vmatprep.subr.mxu0 0.0
    %v1052 = vand.u32 %v843, 4294901760
    %v1053 = vsub.f32 %v843, %v1052
    %v1054 = vand.u32 %v1053, 4294901760
    %v1055 = vsub.f32 %v1053, %v1054
    %v1056 = vand.u32 %v1055, 4294901760
    %1057 = vmatpush1.msra.mxu0 %v1056
    %1058 = vmatprep.subr.mxu0 0.0
    %v1059 = vand.u32 %v844, 4294901760
    %v1060 = vsub.f32 %v844, %v1059
    %v1061 = vand.u32 %v1060, 4294901760
    %v1062 = vsub.f32 %v1060, %v1061
    %v1063 = vand.u32 %v1062, 4294901760
    %1064 = vmatpush1.msra.mxu0 %v1063
    %1065 = vmatprep.subr.mxu0 0.0
    %v1066 = vand.u32 %v845, 4294901760
    %v1067 = vsub.f32 %v845, %v1066
    %v1068 = vand.u32 %v1067, 4294901760
    %v1069 = vsub.f32 %v1067, %v1068
    %v1070 = vand.u32 %v1069, 4294901760
    %1071 = vmatpush1.msra.mxu0 %v1070
    %1072 = vmatprep.subr.mxu0 0.0
    %v1073 = vand.u32 %v846, 4294901760
    %v1074 = vsub.f32 %v846, %v1073
    %v1075 = vand.u32 %v1074, 4294901760
    %v1076 = vsub.f32 %v1074, %v1075
    %v1077 = vand.u32 %v1076, 4294901760
    %1078 = vmatpush1.msra.mxu0 %v1077
    %1079 = vmatprep.subr.mxu0 0.0
    %1080 = vmatpush1.msra.mxu0 0.0
    %1081 = vmatprep.subr.mxu0 0.0
    %1082 = vmatpush1.msra.mxu0 0.0
    %1083 = vmatprep.subr.mxu0 0.0
    %1084 = vmatpush1.msra.mxu0 0.0
    %1085 = vmatprep.subr.mxu0 0.0
    %1086 = vmatpush1.msra.mxu0 0.0
    %1087 = vmatprep.subr.mxu0 0.0
    %1088 = vmatpush1.msra.mxu0 0.0
    %1089 = vmatprep.subr.mxu0 0.0
    %1090 = vmatpush1.msra.mxu0 0.0
    %1091 = vmatprep.subr.mxu0 0.0
    %1092 = vmatpush1.msra.mxu0 0.0
    %1093 = vmatprep.subr.mxu0 0.0
    %1094 = vmatpush1.msra.mxu0 0.0
    %1095 = vmatprep.subr.mxu0 0.0
    %1096 = vmatpush1.msra.mxu0 0.0
    %1097 = vmatprep.subr.mxu0 0.0
    %1098 = vmatpush1.msra.mxu0 0.0
    %1099 = vmatprep.subr.mxu0 0.0
    %1100 = vmatpush1.msra.mxu0 0.0
    %1101 = vmatprep.subr.mxu0 0.0
    %1102 = vmatpush1.msra.mxu0 0.0
    %1103 = vmatprep.subr.mxu0 0.0
    %1104 = vmatpush1.msra.mxu0 0.0
    %1105 = vmatprep.subr.mxu0 0.0
    %1106 = vmatpush1.msra.mxu0 0.0
    %1107 = vmatprep.subr.mxu0 0.0
    %1108 = vmatpush1.msra.mxu0 0.0
    %1109 = vmatprep.subr.mxu0 0.0
    %1110 = vmatpush1.msra.mxu0 0.0
    %1111 = vmatprep.mubr.f32.mxu0 0.0
    %v1112 = vand.u32 %v861, 4294901760
    %1113 = vmatmul.mubr.f32.gmra.mrb[0].mxu0 %v1112
    %v1114 = vpop.f32.mrb[0].mxu0
    %v1115 = vadd.f32 %v964, %v1114
    %v1116 = vpop.f32.mrb[0].mxu0
    %1117 = vdwg.mxu0
    %1118 = vmatprep.subr.mxu0 0.0
    %v1119 = vand.u32 %v831, 4294901760
    %v1120 = vsub.f32 %v831, %v1119
    %1121 = vmatpush1.msra.mxu0 %v1120
    %1122 = vmatprep.subr.mxu0 0.0
    %v1123 = vand.u32 %v832, 4294901760
    %v1124 = vsub.f32 %v832, %v1123
    %1125 = vmatpush1.msra.mxu0 %v1124
    %1126 = vmatprep.subr.mxu0 0.0
    %v1127 = vand.u32 %v833, 4294901760
    %v1128 = vsub.f32 %v833, %v1127
    %1129 = vmatpush1.msra.mxu0 %v1128
    %1130 = vmatprep.subr.mxu0 0.0
    %v1131 = vand.u32 %v834, 4294901760
    %v1132 = vsub.f32 %v834, %v1131
    %1133 = vmatpush1.msra.mxu0 %v1132
    %1134 = vmatprep.subr.mxu0 0.0
    %v1135 = vand.u32 %v835, 4294901760
    %v1136 = vsub.f32 %v835, %v1135
    %1137 = vmatpush1.msra.mxu0 %v1136
    %1138 = vmatprep.subr.mxu0 0.0
    %v1139 = vand.u32 %v836, 4294901760
    %v1140 = vsub.f32 %v836, %v1139
    %1141 = vmatpush1.msra.mxu0 %v1140
    %1142 = vmatprep.subr.mxu0 0.0
    %v1143 = vand.u32 %v837, 4294901760
    %v1144 = vsub.f32 %v837, %v1143
    %1145 = vmatpush1.msra.mxu0 %v1144
    %1146 = vmatprep.subr.mxu0 0.0
    %v1147 = vand.u32 %v838, 4294901760
    %v1148 = vsub.f32 %v838, %v1147
    %1149 = vmatpush1.msra.mxu0 %v1148
    %1150 = vmatprep.subr.mxu0 0.0
    %v1151 = vand.u32 %v839, 4294901760
    %v1152 = vsub.f32 %v839, %v1151
    %1153 = vmatpush1.msra.mxu0 %v1152
    %1154 = vmatprep.subr.mxu0 0.0
    %v1155 = vand.u32 %v840, 4294901760
    %v1156 = vsub.f32 %v840, %v1155
    %1157 = vmatpush1.msra.mxu0 %v1156
    %1158 = vmatprep.subr.mxu0 0.0
    %v1159 = vand.u32 %v841, 4294901760
    %v1160 = vsub.f32 %v841, %v1159
    %1161 = vmatpush1.msra.mxu0 %v1160
    %1162 = vmatprep.subr.mxu0 0.0
    %v1163 = vand.u32 %v842, 4294901760
    %v1164 = vsub.f32 %v842, %v1163
    %1165 = vmatpush1.msra.mxu0 %v1164
    %1166 = vmatprep.subr.mxu0 0.0
    %v1167 = vand.u32 %v843, 4294901760
    %v1168 = vsub.f32 %v843, %v1167
    %1169 = vmatpush1.msra.mxu0 %v1168
    %1170 = vmatprep.subr.mxu0 0.0
    %v1171 = vand.u32 %v844, 4294901760
    %v1172 = vsub.f32 %v844, %v1171
    %1173 = vmatpush1.msra.mxu0 %v1172
    %1174 = vmatprep.subr.mxu0 0.0
    %v1175 = vand.u32 %v845, 4294901760
    %v1176 = vsub.f32 %v845, %v1175
    %1177 = vmatpush1.msra.mxu0 %v1176
    %1178 = vmatprep.subr.mxu0 0.0
    %v1179 = vand.u32 %v846, 4294901760
    %v1180 = vsub.f32 %v846, %v1179
    %1181 = vmatpush1.msra.mxu0 %v1180
    %1182 = vmatprep.subr.mxu0 0.0
    %1183 = vmatpush1.msra.mxu0 0.0
    %1184 = vmatprep.subr.mxu0 0.0
    %1185 = vmatpush1.msra.mxu0 0.0
    %1186 = vmatprep.subr.mxu0 0.0
    %1187 = vmatpush1.msra.mxu0 0.0
    %1188 = vmatprep.subr.mxu0 0.0
    %1189 = vmatpush1.msra.mxu0 0.0
    %1190 = vmatprep.subr.mxu0 0.0
    %1191 = vmatpush1.msra.mxu0 0.0
    %1192 = vmatprep.subr.mxu0 0.0
    %1193 = vmatpush1.msra.mxu0 0.0
    %1194 = vmatprep.subr.mxu0 0.0
    %1195 = vmatpush1.msra.mxu0 0.0
    %1196 = vmatprep.subr.mxu0 0.0
    %1197 = vmatpush1.msra.mxu0 0.0
    %1198 = vmatprep.subr.mxu0 0.0
    %1199 = vmatpush1.msra.mxu0 0.0
    %1200 = vmatprep.subr.mxu0 0.0
    %1201 = vmatpush1.msra.mxu0 0.0
    %1202 = vmatprep.subr.mxu0 0.0
    %1203 = vmatpush1.msra.mxu0 0.0
    %1204 = vmatprep.subr.mxu0 0.0
    %1205 = vmatpush1.msra.mxu0 0.0
    %1206 = vmatprep.subr.mxu0 0.0
    %1207 = vmatpush1.msra.mxu0 0.0
    %1208 = vmatprep.subr.mxu0 0.0
    %1209 = vmatpush1.msra.mxu0 0.0
    %1210 = vmatprep.subr.mxu0 0.0
    %1211 = vmatpush1.msra.mxu0 0.0
    %1212 = vmatprep.subr.mxu0 0.0
    %1213 = vmatpush1.msra.mxu0 0.0
    %1214 = vmatprep.mubr.f32.mxu0 0.0
    %v1215 = vand.u32 %v861, 4294901760
    %v1216 = vsub.f32 %v861, %v1215
    %1217 = vmatmul.mubr.f32.gmra.mrb[0].mxu0 %v1216
    %v1218 = vpop.f32.mrb[0].mxu0
    %v1219 = vadd.f32 %v1115, %v1218
    %v1220 = vpop.f32.mrb[0].mxu0
    %1221 = vdwg.mxu0
    %1222 = vmatprep.subr.mxu0 0.0
    %v1223 = vand.u32 %v831, 4294901760
    %1224 = vmatpush1.msra.mxu0 %v1223
    %1225 = vmatprep.subr.mxu0 0.0
    %v1226 = vand.u32 %v832, 4294901760
    %1227 = vmatpush1.msra.mxu0 %v1226
    %1228 = vmatprep.subr.mxu0 0.0
    %v1229 = vand.u32 %v833, 4294901760
    %1230 = vmatpush1.msra.mxu0 %v1229
    %1231 = vmatprep.subr.mxu0 0.0
    %v1232 = vand.u32 %v834, 4294901760
    %1233 = vmatpush1.msra.mxu0 %v1232
    %1234 = vmatprep.subr.mxu0 0.0
    %v1235 = vand.u32 %v835, 4294901760
    %1236 = vmatpush1.msra.mxu0 %v1235
    %1237 = vmatprep.subr.mxu0 0.0
    %v1238 = vand.u32 %v836, 4294901760
    %1239 = vmatpush1.msra.mxu0 %v1238
    %1240 = vmatprep.subr.mxu0 0.0
    %v1241 = vand.u32 %v837, 4294901760
    %1242 = vmatpush1.msra.mxu0 %v1241
    %1243 = vmatprep.subr.mxu0 0.0
    %v1244 = vand.u32 %v838, 4294901760
    %1245 = vmatpush1.msra.mxu0 %v1244
    %1246 = vmatprep.subr.mxu0 0.0
    %v1247 = vand.u32 %v839, 4294901760
    %1248 = vmatpush1.msra.mxu0 %v1247
    %1249 = vmatprep.subr.mxu0 0.0
    %v1250 = vand.u32 %v840, 4294901760
    %1251 = vmatpush1.msra.mxu0 %v1250
    %1252 = vmatprep.subr.mxu0 0.0
    %v1253 = vand.u32 %v841, 4294901760
    %1254 = vmatpush1.msra.mxu0 %v1253
    %1255 = vmatprep.subr.mxu0 0.0
    %v1256 = vand.u32 %v842, 4294901760
    %1257 = vmatpush1.msra.mxu0 %v1256
    %1258 = vmatprep.subr.mxu0 0.0
    %v1259 = vand.u32 %v843, 4294901760
    %1260 = vmatpush1.msra.mxu0 %v1259
    %1261 = vmatprep.subr.mxu0 0.0
    %v1262 = vand.u32 %v844, 4294901760
    %1263 = vmatpush1.msra.mxu0 %v1262
    %1264 = vmatprep.subr.mxu0 0.0
    %v1265 = vand.u32 %v845, 4294901760
    %1266 = vmatpush1.msra.mxu0 %v1265
    %1267 = vmatprep.subr.mxu0 0.0
    %v1268 = vand.u32 %v846, 4294901760
    %1269 = vmatpush1.msra.mxu0 %v1268
    %1270 = vmatprep.subr.mxu0 0.0
    %1271 = vmatpush1.msra.mxu0 0.0
    %1272 = vmatprep.subr.mxu0 0.0
    %1273 = vmatpush1.msra.mxu0 0.0
    %1274 = vmatprep.subr.mxu0 0.0
    %1275 = vmatpush1.msra.mxu0 0.0
    %1276 = vmatprep.subr.mxu0 0.0
    %1277 = vmatpush1.msra.mxu0 0.0
    %1278 = vmatprep.subr.mxu0 0.0
    %1279 = vmatpush1.msra.mxu0 0.0
    %1280 = vmatprep.subr.mxu0 0.0
    %1281 = vmatpush1.msra.mxu0 0.0
    %1282 = vmatprep.subr.mxu0 0.0
    %1283 = vmatpush1.msra.mxu0 0.0
    %1284 = vmatprep.subr.mxu0 0.0
    %1285 = vmatpush1.msra.mxu0 0.0
    %1286 = vmatprep.subr.mxu0 0.0
    %1287 = vmatpush1.msra.mxu0 0.0
    %1288 = vmatprep.subr.mxu0 0.0
    %1289 = vmatpush1.msra.mxu0 0.0
    %1290 = vmatprep.subr.mxu0 0.0
    %1291 = vmatpush1.msra.mxu0 0.0
    %1292 = vmatprep.subr.mxu0 0.0
    %1293 = vmatpush1.msra.mxu0 0.0
    %1294 = vmatprep.subr.mxu0 0.0
    %1295 = vmatpush1.msra.mxu0 0.0
    %1296 = vmatprep.subr.mxu0 0.0
    %1297 = vmatpush1.msra.mxu0 0.0
    %1298 = vmatprep.subr.mxu0 0.0
    %1299 = vmatpush1.msra.mxu0 0.0
    %1300 = vmatprep.subr.mxu0 0.0
    %1301 = vmatpush1.msra.mxu0 0.0
    %1302 = vmatprep.mubr.f32.mxu0 0.0
    %v1303 = vand.u32 %v861, 4294901760
    %v1304 = vsub.f32 %v861, %v1303
    %v1305 = vand.u32 %v1304, 4294901760
    %1306 = vmatmul.mubr.f32.gmra.mrb[0].mxu0 %v1305
    %v1307 = vpop.f32.mrb[0].mxu0
    %v1308 = vadd.f32 %v1219, %v1307
    %v1309 = vpop.f32.mrb[0].mxu0
    %1310 = vdwg.mxu0
    %1311 = vmatprep.subr.mxu0 0.0
    %v1312 = vand.u32 %v831, 4294901760
    %v1313 = vsub.f32 %v831, %v1312
    %v1314 = vand.u32 %v1313, 4294901760
    %1315 = vmatpush1.msra.mxu0 %v1314
    %1316 = vmatprep.subr.mxu0 0.0
    %v1317 = vand.u32 %v832, 4294901760
    %v1318 = vsub.f32 %v832, %v1317
    %v1319 = vand.u32 %v1318, 4294901760
    %1320 = vmatpush1.msra.mxu0 %v1319
    %1321 = vmatprep.subr.mxu0 0.0
    %v1322 = vand.u32 %v833, 4294901760
    %v1323 = vsub.f32 %v833, %v1322
    %v1324 = vand.u32 %v1323, 4294901760
    %1325 = vmatpush1.msra.mxu0 %v1324
    %1326 = vmatprep.subr.mxu0 0.0
    %v1327 = vand.u32 %v834, 4294901760
    %v1328 = vsub.f32 %v834, %v1327
    %v1329 = vand.u32 %v1328, 4294901760
    %1330 = vmatpush1.msra.mxu0 %v1329
    %1331 = vmatprep.subr.mxu0 0.0
    %v1332 = vand.u32 %v835, 4294901760
    %v1333 = vsub.f32 %v835, %v1332
    %v1334 = vand.u32 %v1333, 4294901760
    %1335 = vmatpush1.msra.mxu0 %v1334
    %1336 = vmatprep.subr.mxu0 0.0
    %v1337 = vand.u32 %v836, 4294901760
    %v1338 = vsub.f32 %v836, %v1337
    %v1339 = vand.u32 %v1338, 4294901760
    %1340 = vmatpush1.msra.mxu0 %v1339
    %1341 = vmatprep.subr.mxu0 0.0
    %v1342 = vand.u32 %v837, 4294901760
    %v1343 = vsub.f32 %v837, %v1342
    %v1344 = vand.u32 %v1343, 4294901760
    %1345 = vmatpush1.msra.mxu0 %v1344
    %1346 = vmatprep.subr.mxu0 0.0
    %v1347 = vand.u32 %v838, 4294901760
    %v1348 = vsub.f32 %v838, %v1347
    %v1349 = vand.u32 %v1348, 4294901760
    %1350 = vmatpush1.msra.mxu0 %v1349
    %1351 = vmatprep.subr.mxu0 0.0
    %v1352 = vand.u32 %v839, 4294901760
    %v1353 = vsub.f32 %v839, %v1352
    %v1354 = vand.u32 %v1353, 4294901760
    %1355 = vmatpush1.msra.mxu0 %v1354
    %1356 = vmatprep.subr.mxu0 0.0
    %v1357 = vand.u32 %v840, 4294901760
    %v1358 = vsub.f32 %v840, %v1357
    %v1359 = vand.u32 %v1358, 4294901760
    %1360 = vmatpush1.msra.mxu0 %v1359
    %1361 = vmatprep.subr.mxu0 0.0
    %v1362 = vand.u32 %v841, 4294901760
    %v1363 = vsub.f32 %v841, %v1362
    %v1364 = vand.u32 %v1363, 4294901760
    %1365 = vmatpush1.msra.mxu0 %v1364
    %1366 = vmatprep.subr.mxu0 0.0
    %v1367 = vand.u32 %v842, 4294901760
    %v1368 = vsub.f32 %v842, %v1367
    %v1369 = vand.u32 %v1368, 4294901760
    %1370 = vmatpush1.msra.mxu0 %v1369
    %1371 = vmatprep.subr.mxu0 0.0
    %v1372 = vand.u32 %v843, 4294901760
    %v1373 = vsub.f32 %v843, %v1372
    %v1374 = vand.u32 %v1373, 4294901760
    %1375 = vmatpush1.msra.mxu0 %v1374
    %1376 = vmatprep.subr.mxu0 0.0
    %v1377 = vand.u32 %v844, 4294901760
    %v1378 = vsub.f32 %v844, %v1377
    %v1379 = vand.u32 %v1378, 4294901760
    %1380 = vmatpush1.msra.mxu0 %v1379
    %1381 = vmatprep.subr.mxu0 0.0
    %v1382 = vand.u32 %v845, 4294901760
    %v1383 = vsub.f32 %v845, %v1382
    %v1384 = vand.u32 %v1383, 4294901760
    %1385 = vmatpush1.msra.mxu0 %v1384
    %1386 = vmatprep.subr.mxu0 0.0
    %v1387 = vand.u32 %v846, 4294901760
    %v1388 = vsub.f32 %v846, %v1387
    %v1389 = vand.u32 %v1388, 4294901760
    %1390 = vmatpush1.msra.mxu0 %v1389
    %1391 = vmatprep.subr.mxu0 0.0
    %1392 = vmatpush1.msra.mxu0 0.0
    %1393 = vmatprep.subr.mxu0 0.0
    %1394 = vmatpush1.msra.mxu0 0.0
    %1395 = vmatprep.subr.mxu0 0.0
    %1396 = vmatpush1.msra.mxu0 0.0
    %1397 = vmatprep.subr.mxu0 0.0
    %1398 = vmatpush1.msra.mxu0 0.0
    %1399 = vmatprep.subr.mxu0 0.0
    %1400 = vmatpush1.msra.mxu0 0.0
    %1401 = vmatprep.subr.mxu0 0.0
    %1402 = vmatpush1.msra.mxu0 0.0
    %1403 = vmatprep.subr.mxu0 0.0
    %1404 = vmatpush1.msra.mxu0 0.0
    %1405 = vmatprep.subr.mxu0 0.0
    %1406 = vmatpush1.msra.mxu0 0.0
    %1407 = vmatprep.subr.mxu0 0.0
    %1408 = vmatpush1.msra.mxu0 0.0
    %1409 = vmatprep.subr.mxu0 0.0
    %1410 = vmatpush1.msra.mxu0 0.0
    %1411 = vmatprep.subr.mxu0 0.0
    %1412 = vmatpush1.msra.mxu0 0.0
    %1413 = vmatprep.subr.mxu0 0.0
    %1414 = vmatpush1.msra.mxu0 0.0
    %1415 = vmatprep.subr.mxu0 0.0
    %1416 = vmatpush1.msra.mxu0 0.0
    %1417 = vmatprep.subr.mxu0 0.0
    %1418 = vmatpush1.msra.mxu0 0.0
    %1419 = vmatprep.subr.mxu0 0.0
    %1420 = vmatpush1.msra.mxu0 0.0
    %1421 = vmatprep.subr.mxu0 0.0
    %1422 = vmatpush1.msra.mxu0 0.0
    %1423 = vmatprep.mubr.f32.mxu0 0.0
    %v1424 = vand.u32 %v861, 4294901760
    %1425 = vmatmul.mubr.f32.gmra.mrb[0].mxu0 %v1424
    %v1426 = vpop.f32.mrb[0].mxu0
    %v1427 = vadd.f32 %v1308, %v1426
    %v1428 = vpop.f32.mrb[0].mxu0
    %1429 = vdwg.mxu0
    %1430 = vmatprep.subr.mxu0 0.0
    %v1431 = vand.u32 %v831, 4294901760
    %1432 = vmatpush1.msra.mxu0 %v1431
    %1433 = vmatprep.subr.mxu0 0.0
    %v1434 = vand.u32 %v832, 4294901760
    %1435 = vmatpush1.msra.mxu0 %v1434
    %1436 = vmatprep.subr.mxu0 0.0
    %v1437 = vand.u32 %v833, 4294901760
    %1438 = vmatpush1.msra.mxu0 %v1437
    %1439 = vmatprep.subr.mxu0 0.0
    %v1440 = vand.u32 %v834, 4294901760
    %1441 = vmatpush1.msra.mxu0 %v1440
    %1442 = vmatprep.subr.mxu0 0.0
    %v1443 = vand.u32 %v835, 4294901760
    %1444 = vmatpush1.msra.mxu0 %v1443
    %1445 = vmatprep.subr.mxu0 0.0
    %v1446 = vand.u32 %v836, 4294901760
    %1447 = vmatpush1.msra.mxu0 %v1446
    %1448 = vmatprep.subr.mxu0 0.0
    %v1449 = vand.u32 %v837, 4294901760
    %1450 = vmatpush1.msra.mxu0 %v1449
    %1451 = vmatprep.subr.mxu0 0.0
    %v1452 = vand.u32 %v838, 4294901760
    %1453 = vmatpush1.msra.mxu0 %v1452
    %1454 = vmatprep.subr.mxu0 0.0
    %v1455 = vand.u32 %v839, 4294901760
    %1456 = vmatpush1.msra.mxu0 %v1455
    %1457 = vmatprep.subr.mxu0 0.0
    %v1458 = vand.u32 %v840, 4294901760
    %1459 = vmatpush1.msra.mxu0 %v1458
    %1460 = vmatprep.subr.mxu0 0.0
    %v1461 = vand.u32 %v841, 4294901760
    %1462 = vmatpush1.msra.mxu0 %v1461
    %1463 = vmatprep.subr.mxu0 0.0
    %v1464 = vand.u32 %v842, 4294901760
    %1465 = vmatpush1.msra.mxu0 %v1464
    %1466 = vmatprep.subr.mxu0 0.0
    %v1467 = vand.u32 %v843, 4294901760
    %1468 = vmatpush1.msra.mxu0 %v1467
    %1469 = vmatprep.subr.mxu0 0.0
    %v1470 = vand.u32 %v844, 4294901760
    %1471 = vmatpush1.msra.mxu0 %v1470
    %1472 = vmatprep.subr.mxu0 0.0
    %v1473 = vand.u32 %v845, 4294901760
    %1474 = vmatpush1.msra.mxu0 %v1473
    %1475 = vmatprep.subr.mxu0 0.0
    %v1476 = vand.u32 %v846, 4294901760
    %1477 = vmatpush1.msra.mxu0 %v1476
    %1478 = vmatprep.subr.mxu0 0.0
    %1479 = vmatpush1.msra.mxu0 0.0
    %1480 = vmatprep.subr.mxu0 0.0
    %1481 = vmatpush1.msra.mxu0 0.0
    %1482 = vmatprep.subr.mxu0 0.0
    %1483 = vmatpush1.msra.mxu0 0.0
    %1484 = vmatprep.subr.mxu0 0.0
    %1485 = vmatpush1.msra.mxu0 0.0
    %1486 = vmatprep.subr.mxu0 0.0
    %1487 = vmatpush1.msra.mxu0 0.0
    %1488 = vmatprep.subr.mxu0 0.0
    %1489 = vmatpush1.msra.mxu0 0.0
    %1490 = vmatprep.subr.mxu0 0.0
    %1491 = vmatpush1.msra.mxu0 0.0
    %1492 = vmatprep.subr.mxu0 0.0
    %1493 = vmatpush1.msra.mxu0 0.0
    %1494 = vmatprep.subr.mxu0 0.0
    %1495 = vmatpush1.msra.mxu0 0.0
    %1496 = vmatprep.subr.mxu0 0.0
    %1497 = vmatpush1.msra.mxu0 0.0
    %1498 = vmatprep.subr.mxu0 0.0
    %1499 = vmatpush1.msra.mxu0 0.0
    %1500 = vmatprep.subr.mxu0 0.0
    %1501 = vmatpush1.msra.mxu0 0.0
    %1502 = vmatprep.subr.mxu0 0.0
    %1503 = vmatpush1.msra.mxu0 0.0
    %1504 = vmatprep.subr.mxu0 0.0
    %1505 = vmatpush1.msra.mxu0 0.0
    %1506 = vmatprep.subr.mxu0 0.0
    %1507 = vmatpush1.msra.mxu0 0.0
    %1508 = vmatprep.subr.mxu0 0.0
    %1509 = vmatpush1.msra.mxu0 0.0
    %1510 = vmatprep.mubr.f32.mxu0 0.0
    %v1511 = vand.u32 %v861, 4294901760
    %1512 = vmatmul.mubr.f32.gmra.mrb[0].mxu0 %v1511
    %v1513 = vpop.f32.mrb[0].mxu0
    %v1514 = vadd.f32 %v1427, %v1513
    %v1515 = vpop.f32.mrb[0].mxu0
    %1516 = vdwg.mxu0
    %v1517 = vadd.f32 %v875, %v1514
    %1518 = vst.msk [vmem:[#allocation4] sm:$0xff] %vm48, %v1517
    %1519 = vst.msk [vmem:[#allocation2] sm:$0xff] %vm867, %v850
    // Predicated region
    $region22: #{tpu_custom_call.1} parent=1 // pred_check
      %p1520 = pneg %p19
    $region23: #{tpu_custom_call.1} parent=1 // pred_check_branch
      %1522 = sbr.rel (%p1520) target = $region25
    $region24: #{tpu_custom_call.1} parent=1 // pred_region
      %v1523 = vld [vmem:[#allocation3] sm:$0xff]
      %v1524 = vrcp.pop %v1523
      %v1525 = vld [vmem:[#allocation4] sm:$0xff]
      %1527 = vset.pattern.permute.xlu0 0
      %1528 = vperm.xlu0 %1527, %v1524
      %v1529 = vpop.permute.xlu0 %1528
      %v1531 = vmul.f32 %v1525, %v1529
      %1532 = vst.msk [vmem:[#allocation6] sm:$0xff] %vm48, %v1531
    $region25: #{tpu_custom_call.1} parent=1 // pred_fallthru
      _
    // Predicated region
    $region26: #{tpu_custom_call.1} parent=1 // pred_check
      _
    $region27: #{tpu_custom_call.1} parent=1 // pred_check_branch
      %1534 = sbr.rel (0) target = $region29
    $region28: #{tpu_custom_call.1} parent=1 // pred_region
      %s1536 = ssub.s32 128, 16
      %1537 = vsyncadd [#allocation7], %s1536
      %s1538 = sshll.u32 [#allocation6], 4
      %s1539 = int_to_ptr.vmem [resolvable:$true] %s1538
      %1544 = dma.vmem_to_hbm [thread:$0]  %s1539, 16, %s4, [#allocation7], 16, 16, 1
    $region29: #{tpu_custom_call.1} parent=1 // pred_fallthru
      _
    // Predicated region
    $region30: #{tpu_custom_call.1} parent=1 // pred_check
      _
    $region31: #{tpu_custom_call.1} parent=1 // pred_check_branch
      %1546 = sbr.rel (0) target = $region33
    $region32: #{tpu_custom_call.1} parent=1 // pred_region
      %1547 = dma.done [#allocation7], 128
    $region33: #{tpu_custom_call.1} parent=1 // pred_fallthru
      _
    %1548 = vsyncpa [#allocation7], 1

</llo_original>
